<compile_context>
chip_gen: v5e
topology: v5e:2x2
jax: 0.10.0
libtpu: 0.0.40
codegen_flags: <defaults>
</compile_context>

<pallas_src>
import math

import jax
import jax.numpy as jnp
from jax.experimental import pallas as pl

B, S, H = 2, 8, 32          # batch, seq, hidden
NH = 4                      # attention heads
HD = H // NH                # head dim
FF = 64                     # FFN intermediate
LAYERS = 2
VOCAB = 100
MAX_POS = 64
N_MODALITY = 4              # nn.Embedding(4, hidden)
LN_EPS = 1e-12
NEG_INF = -1e9


# --------------------------------------------------------------------------
# Single fused kernel: embedding LN -> 2 encoder layers -> CLS + modality add.
# Whole batch processed per invocation (no grid, no scratch).
# --------------------------------------------------------------------------
def _bert_fwd_kernel(emb_ref, mask_ref, mod_ref, embln_ref,
                     wqkv_ref, bqkv_ref, wo_ref, vech_ref,
                     w1_ref, b1_ref, w2_ref,
                     out_ref):
    b, s, h = emb_ref.shape
    bs = b * s
    bf16 = jnp.bfloat16
    f32 = jnp.float32

    def layer_norm(y, g, beta):                       # y: (R, H) f32
        mu = jnp.mean(y, axis=-1, keepdims=True)
        yc = y - mu
        var = jnp.mean(yc * yc, axis=-1, keepdims=True)
        return yc * jax.lax.rsqrt(var + LN_EPS) * g + beta

    # Embedding LayerNorm (f32 elementwise).
    x = layer_norm(emb_ref[...].reshape(bs, h),
                   embln_ref[0:1, :], embln_ref[1:2, :])

    # Additive attention mask built in-kernel from the (B, S) padding mask.
    neg = ((1.0 - mask_ref[...]) * NEG_INF)[:, None, :]        # (B, 1, S)

    for l in range(LAYERS):                 # static unroll, LAYERS=2
        wqkv = wqkv_ref[l]                  # (H, 3H) bf16, 1/sqrt(hd) folded into Q part
        bqkv = bqkv_ref[l]                  # (1, 3H)  f32
        wo = wo_ref[l]                      # (H, H)   bf16
        vech = vech_ref[l]                  # (6, H)   f32: [bo, g1, be1, g2, be2, bf2]
        bo, g1, be1 = vech[0:1, :], vech[1:2, :], vech[2:3, :]
        g2, be2, bf2 = vech[3:4, :], vech[4:5, :], vech[5:6, :]
        w1, b1, w2 = w1_ref[l], b1_ref[l], w2_ref[l]

        # Fused QKV projection: one (B*S,H)@(H,3H) matmul, bf16-in / f32-acc.
        qkv = jnp.dot(x.astype(bf16), wqkv,
                      preferred_element_type=f32) + bqkv                # (BS, 3H)
        qkv = qkv.reshape(b, s, 3 * h)
        q = qkv[:, :, 0:h].astype(bf16)
        k = qkv[:, :, h:2 * h].astype(bf16)
        v = qkv[:, :, 2 * h:3 * h].astype(bf16)

        # Multi-head attention, heads statically unrolled, batched over B.
        # The output projection is folded into the head loop:
        #   attn = sum_h (softmax(q_h k_h^T) v_h) @ Wo[h*HD:(h+1)*HD, :]
        # so no per-head context scratch / narrow masked stores are needed.
        attn_parts = []
        for hh in range(NH):
            sl = slice(hh * HD, (hh + 1) * HD)
            sc = jnp.einsum('bqd,bkd->bqk', q[:, :, sl], k[:, :, sl],
                            preferred_element_type=f32) + neg           # (B,S,S)
            m = jnp.max(sc, axis=-1, keepdims=True)
            e = jnp.exp(sc - m)
            p = e * pl.reciprocal(jnp.sum(e, axis=-1, keepdims=True), approx=True)
            ctx_h = jnp.einsum('bqk,bkd->bqd', p.astype(bf16), v[:, :, sl],
                               preferred_element_type=f32)              # (B,S,HD)
            attn_parts.append(
                jnp.dot(ctx_h.reshape(bs, HD).astype(bf16), wo[sl, :],
                        preferred_element_type=f32))                    # (BS, H)
        attn = attn_parts[0] + attn_parts[1] + attn_parts[2] + attn_parts[3] + bo

        x1 = layer_norm(x + attn, g1, be1)

        # FFN.
        mid = jnp.dot(x1.astype(bf16), w1,
                      preferred_element_type=f32) + b1
        mid = jax.nn.gelu(mid)   # tanh-approx GELU; TODO(synk): erf GELU for bit-exact HF BERT
        ffn = jnp.dot(mid.astype(bf16), w2,
                      preferred_element_type=f32) + bf2
        x = layer_norm(x1 + ffn, g2, be2)

    cls = x.reshape(b, s, h)[:, 0, :]         # last_hidden_state[:, 0, :]
    out_ref[...] = cls + mod_ref[...]         # text_feature += modality_feature


def base_bert_encoder(emb, mask_f32, mod, p):
    b, s, h = emb.shape
    return pl.pallas_call(
        _bert_fwd_kernel,
        out_shape=jax.ShapeDtypeStruct((b, h), jnp.float32),
    )(emb, mask_f32, mod, p['emb_ln'],
      p['w_qkv'], p['b_qkv'], p['w_o'], p['vec_h'],
      p['w1'], p['b1'], p['w2'])


# --------------------------------------------------------------------------
# Parameters (deterministic, synthetic), packed for the fused kernel.
# --------------------------------------------------------------------------
def init_params(key):
    keys = jax.random.split(key, 4 + 12 * LAYERS)
    it = iter(keys)

    def nrm(shape, scale=0.02):
        return (scale * jax.random.normal(next(it), shape)).astype(jnp.float32)

    params = {
        'word_emb': nrm((VOCAB, H)),
        'pos_emb': nrm((MAX_POS, H)),
        'type_emb': nrm((2, H)),
        'emb_ln': jnp.stack([jnp.ones((H,), jnp.float32),
                             jnp.zeros((H,), jnp.float32)]),   # rows [gamma, beta]
        'modality_emb': nrm((N_MODALITY, H)),                  # nn.Embedding(4, hidden)
    }

    scale = 1.0 / math.sqrt(HD)
    wqkv_l, bqkv_l, wo_l, vech_l, w1_l, b1_l, w2_l = [], [], [], [], [], [], []
    for _ in range(LAYERS):
        wq, wk, wv = nrm((H, H)), nrm((H, H)), nrm((H, H))
        bq, bk, bv = nrm((H,)), nrm((H,)), nrm((H,))
        wo, bo = nrm((H, H)), nrm((H,))
        w1, bf1 = nrm((H, FF)), nrm((FF,))
        w2, bf2 = nrm((FF, H)), nrm((H,))
        g1 = jnp.ones((H,), jnp.float32); be1 = jnp.zeros((H,), jnp.float32)
        g2 = jnp.ones((H,), jnp.float32); be2 = jnp.zeros((H,), jnp.float32)
        # Fuse Q/K/V and fold the 1/sqrt(hd) attention scale into Q (free).
        wqkv_l.append(jnp.concatenate([wq * scale, wk, wv], axis=1))      # (H, 3H)
        bqkv_l.append(jnp.concatenate([bq * scale, bk, bv])[None, :])     # (1, 3H)
        wo_l.append(wo)
        vech_l.append(jnp.stack([bo, g1, be1, g2, be2, bf2]))             # (6, H)
        w1_l.append(w1)
        b1_l.append(bf1[None, :])                                         # (1, FF)
        w2_l.append(w2)

    params.update(
        w_qkv=jnp.stack(wqkv_l).astype(jnp.bfloat16),   # (L, H, 3H) bf16
        b_qkv=jnp.stack(bqkv_l),                        # (L, 1, 3H) f32
        w_o=jnp.stack(wo_l).astype(jnp.bfloat16),       # (L, H, H)  bf16
        vec_h=jnp.stack(vech_l),                        # (L, 6, H)  f32
        w1=jnp.stack(w1_l).astype(jnp.bfloat16),        # (L, H, FF) bf16
        b1=jnp.stack(b1_l),                             # (L, 1, FF) f32
        w2=jnp.stack(w2_l).astype(jnp.bfloat16),        # (L, FF, H) bf16
    )
    return params


# --------------------------------------------------------------------------
# Forward pass (mirrors BaseBERT.forward); embedding gathers stay in JAX glue.
# --------------------------------------------------------------------------
def base_bert_forward(params, token_ids, attn_mask, modality):
    b, s = token_ids.shape
    emb = (jnp.take(params['word_emb'], token_ids, axis=0)
           + params['pos_emb'][:s][None, :, :]
           + params['type_emb'][0][None, None, :])
    mod = jnp.take(params['modality_emb'], modality, axis=0)     # (B, H)
    return base_bert_encoder(emb, attn_mask.astype(jnp.float32), mod, params)


if __name__ == "__main__":
    key = jax.random.PRNGKey(0)
    pkey, ikey, mkey = jax.random.split(key, 3)

    params = init_params(pkey)
    token_ids = jax.random.randint(ikey, (B, S), 0, VOCAB, dtype=jnp.int32)
    # Second example has 3 padding tokens to exercise the attention mask.
    attn_mask = jnp.array([[1] * S, [1] * (S - 3) + [0] * 3], dtype=jnp.int32)
    modality = jax.random.randint(mkey, (B,), 0, N_MODALITY, dtype=jnp.int32)

    fwd = jax.jit(base_bert_forward)
    out = jax.block_until_ready(fwd(params, token_ids, attn_mask, modality))

    assert out.shape == (B, H) and out.dtype == jnp.float32
    assert bool(jnp.all(jnp.isfinite(out)))
    print("KERNEL_OK")
</pallas_src>

<mosaic_0001>
module attributes {stable_mosaic.version = 11 : i64} {
  func.func @_bert_fwd_kernel(%arg0: memref<2x8x32xf32, #tpu.memory_space<vmem>>, %arg1: memref<2x8xf32, #tpu.memory_space<vmem>>, %arg2: memref<2x32xf32, #tpu.memory_space<vmem>>, %arg3: memref<2x32xf32, #tpu.memory_space<vmem>>, %arg4: memref<2x32x96xbf16, #tpu.memory_space<vmem>>, %arg5: memref<2x1x96xf32, #tpu.memory_space<vmem>>, %arg6: memref<2x32x32xbf16, #tpu.memory_space<vmem>>, %arg7: memref<2x6x32xf32, #tpu.memory_space<vmem>>, %arg8: memref<2x32x64xbf16, #tpu.memory_space<vmem>>, %arg9: memref<2x1x64xf32, #tpu.memory_space<vmem>>, %arg10: memref<2x64x32xbf16, #tpu.memory_space<vmem>>, %arg11: memref<2x32xf32, #tpu.memory_space<vmem>>) attributes {dimension_semantics = [], scalar_prefetch = 0 : i64, scratch_operands = 0 : i64, tpu.core_type = #tpu.core_type<tc>} {
    %c0 = arith.constant 0 : index
    %c0_0 = arith.constant 0 : index
    %c0_1 = arith.constant 0 : index
    %0 = vector.load %arg0[%c0, %c0_0, %c0_1] : memref<2x8x32xf32, #tpu.memory_space<vmem>>, vector<2x8x32xf32>
    %1 = vector.shape_cast %0 : vector<2x8x32xf32> to vector<16x32xf32>
    %c0_2 = arith.constant 0 : index
    %c0_3 = arith.constant 0 : index
    %2 = vector.load %arg3[%c0_2, %c0_3] : memref<2x32xf32, #tpu.memory_space<vmem>>, vector<1x32xf32>
    %c1 = arith.constant 1 : index
    %c0_4 = arith.constant 0 : index
    %3 = vector.load %arg3[%c1, %c0_4] : memref<2x32xf32, #tpu.memory_space<vmem>>, vector<1x32xf32>
    %cst = arith.constant dense<0.000000e+00> : vector<16xf32>
    %4 = vector.multi_reduction <add>, %1, %cst [1] : vector<16x32xf32> to vector<16xf32>
    %5 = vector.shape_cast %4 : vector<16xf32> to vector<16x1xf32>
    %cst_5 = arith.constant 3.200000e+01 : f32
    %6 = vector.broadcast %cst_5 : f32 to vector<16x1xf32>
    %7 = arith.divf %5, %6 : vector<16x1xf32>
    %8 = vector.broadcast %7 : vector<16x1xf32> to vector<16x32xf32>
    %9 = arith.subf %1, %8 : vector<16x32xf32>
    %10 = arith.mulf %9, %9 : vector<16x32xf32>
    %cst_6 = arith.constant dense<0.000000e+00> : vector<16xf32>
    %11 = vector.multi_reduction <add>, %10, %cst_6 [1] : vector<16x32xf32> to vector<16xf32>
    %12 = vector.shape_cast %11 : vector<16xf32> to vector<16x1xf32>
    %cst_7 = arith.constant 3.200000e+01 : f32
    %13 = vector.broadcast %cst_7 : f32 to vector<16x1xf32>
    %14 = arith.divf %12, %13 : vector<16x1xf32>
    %cst_8 = arith.constant 9.99999996E-13 : f32
    %15 = vector.broadcast %cst_8 : f32 to vector<16x1xf32>
    %16 = arith.addf %14, %15 : vector<16x1xf32>
    %17 = math.rsqrt %16 : vector<16x1xf32>
    %18 = vector.broadcast %17 : vector<16x1xf32> to vector<16x32xf32>
    %19 = arith.mulf %9, %18 : vector<16x32xf32>
    %20 = vector.broadcast %2 : vector<1x32xf32> to vector<16x32xf32>
    %21 = arith.mulf %19, %20 : vector<16x32xf32>
    %22 = vector.broadcast %3 : vector<1x32xf32> to vector<16x32xf32>
    %23 = arith.addf %21, %22 : vector<16x32xf32>
    %c0_9 = arith.constant 0 : index
    %c0_10 = arith.constant 0 : index
    %24 = vector.load %arg1[%c0_9, %c0_10] : memref<2x8xf32, #tpu.memory_space<vmem>>, vector<2x8xf32>
    %cst_11 = arith.constant 1.000000e+00 : f32
    %25 = vector.broadcast %cst_11 : f32 to vector<2x8xf32>
    %26 = arith.subf %25, %24 : vector<2x8xf32>
    %cst_12 = arith.constant -1.000000e+09 : f32
    %27 = vector.broadcast %cst_12 : f32 to vector<2x8xf32>
    %28 = arith.mulf %26, %27 : vector<2x8xf32>
    %29 = vector.shape_cast %28 : vector<2x8xf32> to vector<2x1x8xf32>
    %c0_13 = arith.constant 0 : index
    %c0_14 = arith.constant 0 : index
    %c0_15 = arith.constant 0 : index
    %30 = vector.load %arg4[%c0_13, %c0_14, %c0_15] : memref<2x32x96xbf16, #tpu.memory_space<vmem>>, vector<1x32x96xbf16>
    %31 = vector.shape_cast %30 : vector<1x32x96xbf16> to vector<32x96xbf16>
    %c0_16 = arith.constant 0 : index
    %c0_17 = arith.constant 0 : index
    %c0_18 = arith.constant 0 : index
    %32 = vector.load %arg5[%c0_16, %c0_17, %c0_18] : memref<2x1x96xf32, #tpu.memory_space<vmem>>, vector<1x1x96xf32>
    %33 = vector.shape_cast %32 : vector<1x1x96xf32> to vector<1x96xf32>
    %c0_19 = arith.constant 0 : index
    %c0_20 = arith.constant 0 : index
    %c0_21 = arith.constant 0 : index
    %34 = vector.load %arg6[%c0_19, %c0_20, %c0_21] : memref<2x32x32xbf16, #tpu.memory_space<vmem>>, vector<1x32x32xbf16>
    %35 = vector.shape_cast %34 : vector<1x32x32xbf16> to vector<32x32xbf16>
    %c0_22 = arith.constant 0 : index
    %c0_23 = arith.constant 0 : index
    %c0_24 = arith.constant 0 : index
    %36 = vector.load %arg7[%c0_22, %c0_23, %c0_24] : memref<2x6x32xf32, #tpu.memory_space<vmem>>, vector<1x6x32xf32>
    %37 = vector.shape_cast %36 : vector<1x6x32xf32> to vector<6x32xf32>
    %38 = vector.extract_strided_slice %37 {offsets = [0, 0], sizes = [1, 32], strides = [1, 1]} : vector<6x32xf32> to vector<1x32xf32>
    %39 = vector.extract_strided_slice %37 {offsets = [1, 0], sizes = [1, 32], strides = [1, 1]} : vector<6x32xf32> to vector<1x32xf32>
    %40 = vector.extract_strided_slice %37 {offsets = [2, 0], sizes = [1, 32], strides = [1, 1]} : vector<6x32xf32> to vector<1x32xf32>
    %41 = vector.extract_strided_slice %37 {offsets = [3, 0], sizes = [1, 32], strides = [1, 1]} : vector<6x32xf32> to vector<1x32xf32>
    %42 = vector.extract_strided_slice %37 {offsets = [4, 0], sizes = [1, 32], strides = [1, 1]} : vector<6x32xf32> to vector<1x32xf32>
    %43 = vector.extract_strided_slice %37 {offsets = [5, 0], sizes = [1, 32], strides = [1, 1]} : vector<6x32xf32> to vector<1x32xf32>
    %c0_25 = arith.constant 0 : index
    %c0_26 = arith.constant 0 : index
    %c0_27 = arith.constant 0 : index
    %44 = vector.load %arg8[%c0_25, %c0_26, %c0_27] : memref<2x32x64xbf16, #tpu.memory_space<vmem>>, vector<1x32x64xbf16>
    %45 = vector.shape_cast %44 : vector<1x32x64xbf16> to vector<32x64xbf16>
    %c0_28 = arith.constant 0 : index
    %c0_29 = arith.constant 0 : index
    %c0_30 = arith.constant 0 : index
    %46 = vector.load %arg9[%c0_28, %c0_29, %c0_30] : memref<2x1x64xf32, #tpu.memory_space<vmem>>, vector<1x1x64xf32>
    %47 = vector.shape_cast %46 : vector<1x1x64xf32> to vector<1x64xf32>
    %c0_31 = arith.constant 0 : index
    %c0_32 = arith.constant 0 : index
    %c0_33 = arith.constant 0 : index
    %48 = vector.load %arg10[%c0_31, %c0_32, %c0_33] : memref<2x64x32xbf16, #tpu.memory_space<vmem>>, vector<1x64x32xbf16>
    %49 = vector.shape_cast %48 : vector<1x64x32xbf16> to vector<64x32xbf16>
    %50 = arith.truncf %23 : vector<16x32xf32> to vector<16x32xbf16>
    %cst_34 = arith.constant dense<0.000000e+00> : vector<16x96xf32>
    %51 = tpu.matmul %50, %31, %cst_34 {dimension_numbers = #tpu.dot_dimension_numbers<[1], [0], [0], [1], [0, 0, 1, 1], [], []>} : vector<16x32xbf16>, vector<32x96xbf16>, vector<16x96xf32> -> vector<16x96xf32>
    %52 = vector.broadcast %33 : vector<1x96xf32> to vector<16x96xf32>
    %53 = arith.addf %51, %52 : vector<16x96xf32>
    %54 = vector.shape_cast %53 : vector<16x96xf32> to vector<2x8x96xf32>
    %55 = vector.extract_strided_slice %54 {offsets = [0, 0, 0], sizes = [2, 8, 32], strides = [1, 1, 1]} : vector<2x8x96xf32> to vector<2x8x32xf32>
    %56 = arith.truncf %55 : vector<2x8x32xf32> to vector<2x8x32xbf16>
    %57 = vector.extract_strided_slice %54 {offsets = [0, 0, 32], sizes = [2, 8, 32], strides = [1, 1, 1]} : vector<2x8x96xf32> to vector<2x8x32xf32>
    %58 = arith.truncf %57 : vector<2x8x32xf32> to vector<2x8x32xbf16>
    %59 = vector.extract_strided_slice %54 {offsets = [0, 0, 64], sizes = [2, 8, 32], strides = [1, 1, 1]} : vector<2x8x96xf32> to vector<2x8x32xf32>
    %60 = arith.truncf %59 : vector<2x8x32xf32> to vector<2x8x32xbf16>
    %61 = vector.extract_strided_slice %56 {offsets = [0, 0, 0], sizes = [2, 8, 8], strides = [1, 1, 1]} : vector<2x8x32xbf16> to vector<2x8x8xbf16>
    %62 = vector.extract_strided_slice %58 {offsets = [0, 0, 0], sizes = [2, 8, 8], strides = [1, 1, 1]} : vector<2x8x32xbf16> to vector<2x8x8xbf16>
    "tpu.trace_start"() <{level = 10 : i32, message = "bqd,bkd->bqk"}> : () -> ()
    %cst_35 = arith.constant dense<0.000000e+00> : vector<2x8x8xf32>
    %63 = tpu.matmul %61, %62, %cst_35 {dimension_numbers = #tpu.dot_dimension_numbers<[2], [2], [1], [1], [0, 0, 0, 1, 1, 1], [0], [0]>} : vector<2x8x8xbf16>, vector<2x8x8xbf16>, vector<2x8x8xf32> -> vector<2x8x8xf32>
    "tpu.trace_stop"() : () -> ()
    %64 = vector.broadcast %29 : vector<2x1x8xf32> to vector<2x8x8xf32>
    %65 = arith.addf %63, %64 : vector<2x8x8xf32>
    %cst_36 = arith.constant dense<0xFF800000> : vector<2x8xf32>
    %66 = vector.multi_reduction <maximumf>, %65, %cst_36 [2] : vector<2x8x8xf32> to vector<2x8xf32>
    %67 = vector.shape_cast %66 : vector<2x8xf32> to vector<2x8x1xf32>
    %68 = vector.broadcast %67 : vector<2x8x1xf32> to vector<2x8x8xf32>
    %69 = arith.subf %65, %68 : vector<2x8x8xf32>
    %70 = math.exp %69 : vector<2x8x8xf32>
    %cst_37 = arith.constant dense<0.000000e+00> : vector<2x8xf32>
    %71 = vector.multi_reduction <add>, %70, %cst_37 [2] : vector<2x8x8xf32> to vector<2x8xf32>
    %72 = vector.shape_cast %71 : vector<2x8xf32> to vector<2x8x1xf32>
    %73 = tpu.reciprocal %72 {approx = true} : vector<2x8x1xf32> -> vector<2x8x1xf32>
    %74 = vector.broadcast %73 : vector<2x8x1xf32> to vector<2x8x8xf32>
    %75 = arith.mulf %70, %74 : vector<2x8x8xf32>
    %76 = arith.truncf %75 : vector<2x8x8xf32> to vector<2x8x8xbf16>
    %77 = vector.extract_strided_slice %60 {offsets = [0, 0, 0], sizes = [2, 8, 8], strides = [1, 1, 1]} : vector<2x8x32xbf16> to vector<2x8x8xbf16>
    "tpu.trace_start"() <{level = 10 : i32, message = "bqk,bkd->bqd"}> : () -> ()
    %cst_38 = arith.constant dense<0.000000e+00> : vector<2x8x8xf32>
    %78 = tpu.matmul %76, %77, %cst_38 {dimension_numbers = #tpu.dot_dimension_numbers<[2], [1], [1], [2], [0, 0, 0, 1, 1, 2], [0], [0]>} : vector<2x8x8xbf16>, vector<2x8x8xbf16>, vector<2x8x8xf32> -> vector<2x8x8xf32>
    "tpu.trace_stop"() : () -> ()
    %79 = vector.shape_cast %78 : vector<2x8x8xf32> to vector<16x8xf32>
    %80 = arith.truncf %79 : vector<16x8xf32> to vector<16x8xbf16>
    %81 = vector.extract_strided_slice %35 {offsets = [0, 0], sizes = [8, 32], strides = [1, 1]} : vector<32x32xbf16> to vector<8x32xbf16>
    %cst_39 = arith.constant dense<0.000000e+00> : vector<16x32xf32>
    %82 = tpu.matmul %80, %81, %cst_39 {dimension_numbers = #tpu.dot_dimension_numbers<[1], [0], [0], [1], [0, 0, 1, 1], [], []>} : vector<16x8xbf16>, vector<8x32xbf16>, vector<16x32xf32> -> vector<16x32xf32>
    %83 = vector.extract_strided_slice %56 {offsets = [0, 0, 8], sizes = [2, 8, 8], strides = [1, 1, 1]} : vector<2x8x32xbf16> to vector<2x8x8xbf16>
    %84 = vector.extract_strided_slice %58 {offsets = [0, 0, 8], sizes = [2, 8, 8], strides = [1, 1, 1]} : vector<2x8x32xbf16> to vector<2x8x8xbf16>
    "tpu.trace_start"() <{level = 10 : i32, message = "bqd,bkd->bqk"}> : () -> ()
    %cst_40 = arith.constant dense<0.000000e+00> : vector<2x8x8xf32>
    %85 = tpu.matmul %83, %84, %cst_40 {dimension_numbers = #tpu.dot_dimension_numbers<[2], [2], [1], [1], [0, 0, 0, 1, 1, 1], [0], [0]>} : vector<2x8x8xbf16>, vector<2x8x8xbf16>, vector<2x8x8xf32> -> vector<2x8x8xf32>
    "tpu.trace_stop"() : () -> ()
    %86 = vector.broadcast %29 : vector<2x1x8xf32> to vector<2x8x8xf32>
    %87 = arith.addf %85, %86 : vector<2x8x8xf32>
    %cst_41 = arith.constant dense<0xFF800000> : vector<2x8xf32>
    %88 = vector.multi_reduction <maximumf>, %87, %cst_41 [2] : vector<2x8x8xf32> to vector<2x8xf32>
    %89 = vector.shape_cast %88 : vector<2x8xf32> to vector<2x8x1xf32>
    %90 = vector.broadcast %89 : vector<2x8x1xf32> to vector<2x8x8xf32>
    %91 = arith.subf %87, %90 : vector<2x8x8xf32>
    %92 = math.exp %91 : vector<2x8x8xf32>
    %cst_42 = arith.constant dense<0.000000e+00> : vector<2x8xf32>
    %93 = vector.multi_reduction <add>, %92, %cst_42 [2] : vector<2x8x8xf32> to vector<2x8xf32>
    %94 = vector.shape_cast %93 : vector<2x8xf32> to vector<2x8x1xf32>
    %95 = tpu.reciprocal %94 {approx = true} : vector<2x8x1xf32> -> vector<2x8x1xf32>
    %96 = vector.broadcast %95 : vector<2x8x1xf32> to vector<2x8x8xf32>
    %97 = arith.mulf %92, %96 : vector<2x8x8xf32>
    %98 = arith.truncf %97 : vector<2x8x8xf32> to vector<2x8x8xbf16>
    %99 = vector.extract_strided_slice %60 {offsets = [0, 0, 8], sizes = [2, 8, 8], strides = [1, 1, 1]} : vector<2x8x32xbf16> to vector<2x8x8xbf16>
    "tpu.trace_start"() <{level = 10 : i32, message = "bqk,bkd->bqd"}> : () -> ()
    %cst_43 = arith.constant dense<0.000000e+00> : vector<2x8x8xf32>
    %100 = tpu.matmul %98, %99, %cst_43 {dimension_numbers = #tpu.dot_dimension_numbers<[2], [1], [1], [2], [0, 0, 0, 1, 1, 2], [0], [0]>} : vector<2x8x8xbf16>, vector<2x8x8xbf16>, vector<2x8x8xf32> -> vector<2x8x8xf32>
    "tpu.trace_stop"() : () -> ()
    %101 = vector.shape_cast %100 : vector<2x8x8xf32> to vector<16x8xf32>
    %102 = arith.truncf %101 : vector<16x8xf32> to vector<16x8xbf16>
    %103 = vector.extract_strided_slice %35 {offsets = [8, 0], sizes = [8, 32], strides = [1, 1]} : vector<32x32xbf16> to vector<8x32xbf16>
    %cst_44 = arith.constant dense<0.000000e+00> : vector<16x32xf32>
    %104 = tpu.matmul %102, %103, %cst_44 {dimension_numbers = #tpu.dot_dimension_numbers<[1], [0], [0], [1], [0, 0, 1, 1], [], []>} : vector<16x8xbf16>, vector<8x32xbf16>, vector<16x32xf32> -> vector<16x32xf32>
    %105 = vector.extract_strided_slice %56 {offsets = [0, 0, 16], sizes = [2, 8, 8], strides = [1, 1, 1]} : vector<2x8x32xbf16> to vector<2x8x8xbf16>
    %106 = vector.extract_strided_slice %58 {offsets = [0, 0, 16], sizes = [2, 8, 8], strides = [1, 1, 1]} : vector<2x8x32xbf16> to vector<2x8x8xbf16>
    "tpu.trace_start"() <{level = 10 : i32, message = "bqd,bkd->bqk"}> : () -> ()
    %cst_45 = arith.constant dense<0.000000e+00> : vector<2x8x8xf32>
    %107 = tpu.matmul %105, %106, %cst_45 {dimension_numbers = #tpu.dot_dimension_numbers<[2], [2], [1], [1], [0, 0, 0, 1, 1, 1], [0], [0]>} : vector<2x8x8xbf16>, vector<2x8x8xbf16>, vector<2x8x8xf32> -> vector<2x8x8xf32>
    "tpu.trace_stop"() : () -> ()
    %108 = vector.broadcast %29 : vector<2x1x8xf32> to vector<2x8x8xf32>
    %109 = arith.addf %107, %108 : vector<2x8x8xf32>
    %cst_46 = arith.constant dense<0xFF800000> : vector<2x8xf32>
    %110 = vector.multi_reduction <maximumf>, %109, %cst_46 [2] : vector<2x8x8xf32> to vector<2x8xf32>
    %111 = vector.shape_cast %110 : vector<2x8xf32> to vector<2x8x1xf32>
    %112 = vector.broadcast %111 : vector<2x8x1xf32> to vector<2x8x8xf32>
    %113 = arith.subf %109, %112 : vector<2x8x8xf32>
    %114 = math.exp %113 : vector<2x8x8xf32>
    %cst_47 = arith.constant dense<0.000000e+00> : vector<2x8xf32>
    %115 = vector.multi_reduction <add>, %114, %cst_47 [2] : vector<2x8x8xf32> to vector<2x8xf32>
    %116 = vector.shape_cast %115 : vector<2x8xf32> to vector<2x8x1xf32>
    %117 = tpu.reciprocal %116 {approx = true} : vector<2x8x1xf32> -> vector<2x8x1xf32>
    %118 = vector.broadcast %117 : vector<2x8x1xf32> to vector<2x8x8xf32>
    %119 = arith.mulf %114, %118 : vector<2x8x8xf32>
    %120 = arith.truncf %119 : vector<2x8x8xf32> to vector<2x8x8xbf16>
    %121 = vector.extract_strided_slice %60 {offsets = [0, 0, 16], sizes = [2, 8, 8], strides = [1, 1, 1]} : vector<2x8x32xbf16> to vector<2x8x8xbf16>
    "tpu.trace_start"() <{level = 10 : i32, message = "bqk,bkd->bqd"}> : () -> ()
    %cst_48 = arith.constant dense<0.000000e+00> : vector<2x8x8xf32>
    %122 = tpu.matmul %120, %121, %cst_48 {dimension_numbers = #tpu.dot_dimension_numbers<[2], [1], [1], [2], [0, 0, 0, 1, 1, 2], [0], [0]>} : vector<2x8x8xbf16>, vector<2x8x8xbf16>, vector<2x8x8xf32> -> vector<2x8x8xf32>
    "tpu.trace_stop"() : () -> ()
    %123 = vector.shape_cast %122 : vector<2x8x8xf32> to vector<16x8xf32>
    %124 = arith.truncf %123 : vector<16x8xf32> to vector<16x8xbf16>
    %125 = vector.extract_strided_slice %35 {offsets = [16, 0], sizes = [8, 32], strides = [1, 1]} : vector<32x32xbf16> to vector<8x32xbf16>
    %cst_49 = arith.constant dense<0.000000e+00> : vector<16x32xf32>
    %126 = tpu.matmul %124, %125, %cst_49 {dimension_numbers = #tpu.dot_dimension_numbers<[1], [0], [0], [1], [0, 0, 1, 1], [], []>} : vector<16x8xbf16>, vector<8x32xbf16>, vector<16x32xf32> -> vector<16x32xf32>
    %127 = vector.extract_strided_slice %56 {offsets = [0, 0, 24], sizes = [2, 8, 8], strides = [1, 1, 1]} : vector<2x8x32xbf16> to vector<2x8x8xbf16>
    %128 = vector.extract_strided_slice %58 {offsets = [0, 0, 24], sizes = [2, 8, 8], strides = [1, 1, 1]} : vector<2x8x32xbf16> to vector<2x8x8xbf16>
    "tpu.trace_start"() <{level = 10 : i32, message = "bqd,bkd->bqk"}> : () -> ()
    %cst_50 = arith.constant dense<0.000000e+00> : vector<2x8x8xf32>
    %129 = tpu.matmul %127, %128, %cst_50 {dimension_numbers = #tpu.dot_dimension_numbers<[2], [2], [1], [1], [0, 0, 0, 1, 1, 1], [0], [0]>} : vector<2x8x8xbf16>, vector<2x8x8xbf16>, vector<2x8x8xf32> -> vector<2x8x8xf32>
    "tpu.trace_stop"() : () -> ()
    %130 = vector.broadcast %29 : vector<2x1x8xf32> to vector<2x8x8xf32>
    %131 = arith.addf %129, %130 : vector<2x8x8xf32>
    %cst_51 = arith.constant dense<0xFF800000> : vector<2x8xf32>
    %132 = vector.multi_reduction <maximumf>, %131, %cst_51 [2] : vector<2x8x8xf32> to vector<2x8xf32>
    %133 = vector.shape_cast %132 : vector<2x8xf32> to vector<2x8x1xf32>
    %134 = vector.broadcast %133 : vector<2x8x1xf32> to vector<2x8x8xf32>
    %135 = arith.subf %131, %134 : vector<2x8x8xf32>
    %136 = math.exp %135 : vector<2x8x8xf32>
    %cst_52 = arith.constant dense<0.000000e+00> : vector<2x8xf32>
    %137 = vector.multi_reduction <add>, %136, %cst_52 [2] : vector<2x8x8xf32> to vector<2x8xf32>
    %138 = vector.shape_cast %137 : vector<2x8xf32> to vector<2x8x1xf32>
    %139 = tpu.reciprocal %138 {approx = true} : vector<2x8x1xf32> -> vector<2x8x1xf32>
    %140 = vector.broadcast %139 : vector<2x8x1xf32> to vector<2x8x8xf32>
    %141 = arith.mulf %136, %140 : vector<2x8x8xf32>
    %142 = arith.truncf %141 : vector<2x8x8xf32> to vector<2x8x8xbf16>
    %143 = vector.extract_strided_slice %60 {offsets = [0, 0, 24], sizes = [2, 8, 8], strides = [1, 1, 1]} : vector<2x8x32xbf16> to vector<2x8x8xbf16>
    "tpu.trace_start"() <{level = 10 : i32, message = "bqk,bkd->bqd"}> : () -> ()
    %cst_53 = arith.constant dense<0.000000e+00> : vector<2x8x8xf32>
    %144 = tpu.matmul %142, %143, %cst_53 {dimension_numbers = #tpu.dot_dimension_numbers<[2], [1], [1], [2], [0, 0, 0, 1, 1, 2], [0], [0]>} : vector<2x8x8xbf16>, vector<2x8x8xbf16>, vector<2x8x8xf32> -> vector<2x8x8xf32>
    "tpu.trace_stop"() : () -> ()
    %145 = vector.shape_cast %144 : vector<2x8x8xf32> to vector<16x8xf32>
    %146 = arith.truncf %145 : vector<16x8xf32> to vector<16x8xbf16>
    %147 = vector.extract_strided_slice %35 {offsets = [24, 0], sizes = [8, 32], strides = [1, 1]} : vector<32x32xbf16> to vector<8x32xbf16>
    %cst_54 = arith.constant dense<0.000000e+00> : vector<16x32xf32>
    %148 = tpu.matmul %146, %147, %cst_54 {dimension_numbers = #tpu.dot_dimension_numbers<[1], [0], [0], [1], [0, 0, 1, 1], [], []>} : vector<16x8xbf16>, vector<8x32xbf16>, vector<16x32xf32> -> vector<16x32xf32>
    %149 = arith.addf %82, %104 : vector<16x32xf32>
    %150 = arith.addf %149, %126 : vector<16x32xf32>
    %151 = arith.addf %150, %148 : vector<16x32xf32>
    %152 = vector.broadcast %38 : vector<1x32xf32> to vector<16x32xf32>
    %153 = arith.addf %151, %152 : vector<16x32xf32>
    %154 = arith.addf %23, %153 : vector<16x32xf32>
    %cst_55 = arith.constant dense<0.000000e+00> : vector<16xf32>
    %155 = vector.multi_reduction <add>, %154, %cst_55 [1] : vector<16x32xf32> to vector<16xf32>
    %156 = vector.shape_cast %155 : vector<16xf32> to vector<16x1xf32>
    %cst_56 = arith.constant 3.200000e+01 : f32
    %157 = vector.broadcast %cst_56 : f32 to vector<16x1xf32>
    %158 = arith.divf %156, %157 : vector<16x1xf32>
    %159 = vector.broadcast %158 : vector<16x1xf32> to vector<16x32xf32>
    %160 = arith.subf %154, %159 : vector<16x32xf32>
    %161 = arith.mulf %160, %160 : vector<16x32xf32>
    %cst_57 = arith.constant dense<0.000000e+00> : vector<16xf32>
    %162 = vector.multi_reduction <add>, %161, %cst_57 [1] : vector<16x32xf32> to vector<16xf32>
    %163 = vector.shape_cast %162 : vector<16xf32> to vector<16x1xf32>
    %cst_58 = arith.constant 3.200000e+01 : f32
    %164 = vector.broadcast %cst_58 : f32 to vector<16x1xf32>
    %165 = arith.divf %163, %164 : vector<16x1xf32>
    %cst_59 = arith.constant 9.99999996E-13 : f32
    %166 = vector.broadcast %cst_59 : f32 to vector<16x1xf32>
    %167 = arith.addf %165, %166 : vector<16x1xf32>
    %168 = math.rsqrt %167 : vector<16x1xf32>
    %169 = vector.broadcast %168 : vector<16x1xf32> to vector<16x32xf32>
    %170 = arith.mulf %160, %169 : vector<16x32xf32>
    %171 = vector.broadcast %39 : vector<1x32xf32> to vector<16x32xf32>
    %172 = arith.mulf %170, %171 : vector<16x32xf32>
    %173 = vector.broadcast %40 : vector<1x32xf32> to vector<16x32xf32>
    %174 = arith.addf %172, %173 : vector<16x32xf32>
    %175 = arith.truncf %174 : vector<16x32xf32> to vector<16x32xbf16>
    %cst_60 = arith.constant dense<0.000000e+00> : vector<16x64xf32>
    %176 = tpu.matmul %175, %45, %cst_60 {dimension_numbers = #tpu.dot_dimension_numbers<[1], [0], [0], [1], [0, 0, 1, 1], [], []>} : vector<16x32xbf16>, vector<32x64xbf16>, vector<16x64xf32> -> vector<16x64xf32>
    %177 = vector.broadcast %47 : vector<1x64xf32> to vector<16x64xf32>
    %178 = arith.addf %176, %177 : vector<16x64xf32>
    %179 = arith.mulf %178, %178 : vector<16x64xf32>
    %180 = arith.mulf %178, %179 : vector<16x64xf32>
    %cst_61 = arith.constant 4.471500e-02 : f32
    %181 = vector.broadcast %cst_61 : f32 to vector<16x64xf32>
    %182 = arith.mulf %181, %180 : vector<16x64xf32>
    %183 = arith.addf %178, %182 : vector<16x64xf32>
    %cst_62 = arith.constant 0.797884583 : f32
    %184 = vector.broadcast %cst_62 : f32 to vector<16x64xf32>
    %185 = arith.mulf %184, %183 : vector<16x64xf32>
    %186 = math.tanh %185 : vector<16x64xf32>
    %cst_63 = arith.constant 1.000000e+00 : f32
    %187 = vector.broadcast %cst_63 : f32 to vector<16x64xf32>
    %188 = arith.addf %187, %186 : vector<16x64xf32>
    %cst_64 = arith.constant 5.000000e-01 : f32
    %189 = vector.broadcast %cst_64 : f32 to vector<16x64xf32>
    %190 = arith.mulf %189, %188 : vector<16x64xf32>
    %191 = arith.mulf %178, %190 : vector<16x64xf32>
    %192 = arith.truncf %191 : vector<16x64xf32> to vector<16x64xbf16>
    %cst_65 = arith.constant dense<0.000000e+00> : vector<16x32xf32>
    %193 = tpu.matmul %192, %49, %cst_65 {dimension_numbers = #tpu.dot_dimension_numbers<[1], [0], [0], [1], [0, 0, 1, 1], [], []>} : vector<16x64xbf16>, vector<64x32xbf16>, vector<16x32xf32> -> vector<16x32xf32>
    %194 = vector.broadcast %43 : vector<1x32xf32> to vector<16x32xf32>
    %195 = arith.addf %193, %194 : vector<16x32xf32>
    %196 = arith.addf %174, %195 : vector<16x32xf32>
    %cst_66 = arith.constant dense<0.000000e+00> : vector<16xf32>
    %197 = vector.multi_reduction <add>, %196, %cst_66 [1] : vector<16x32xf32> to vector<16xf32>
    %198 = vector.shape_cast %197 : vector<16xf32> to vector<16x1xf32>
    %cst_67 = arith.constant 3.200000e+01 : f32
    %199 = vector.broadcast %cst_67 : f32 to vector<16x1xf32>
    %200 = arith.divf %198, %199 : vector<16x1xf32>
    %201 = vector.broadcast %200 : vector<16x1xf32> to vector<16x32xf32>
    %202 = arith.subf %196, %201 : vector<16x32xf32>
    %203 = arith.mulf %202, %202 : vector<16x32xf32>
    %cst_68 = arith.constant dense<0.000000e+00> : vector<16xf32>
    %204 = vector.multi_reduction <add>, %203, %cst_68 [1] : vector<16x32xf32> to vector<16xf32>
    %205 = vector.shape_cast %204 : vector<16xf32> to vector<16x1xf32>
    %cst_69 = arith.constant 3.200000e+01 : f32
    %206 = vector.broadcast %cst_69 : f32 to vector<16x1xf32>
    %207 = arith.divf %205, %206 : vector<16x1xf32>
    %cst_70 = arith.constant 9.99999996E-13 : f32
    %208 = vector.broadcast %cst_70 : f32 to vector<16x1xf32>
    %209 = arith.addf %207, %208 : vector<16x1xf32>
    %210 = math.rsqrt %209 : vector<16x1xf32>
    %211 = vector.broadcast %210 : vector<16x1xf32> to vector<16x32xf32>
    %212 = arith.mulf %202, %211 : vector<16x32xf32>
    %213 = vector.broadcast %41 : vector<1x32xf32> to vector<16x32xf32>
    %214 = arith.mulf %212, %213 : vector<16x32xf32>
    %215 = vector.broadcast %42 : vector<1x32xf32> to vector<16x32xf32>
    %216 = arith.addf %214, %215 : vector<16x32xf32>
    %c1_71 = arith.constant 1 : index
    %c0_72 = arith.constant 0 : index
    %c0_73 = arith.constant 0 : index
    %217 = vector.load %arg4[%c1_71, %c0_72, %c0_73] : memref<2x32x96xbf16, #tpu.memory_space<vmem>>, vector<1x32x96xbf16>
    %218 = vector.shape_cast %217 : vector<1x32x96xbf16> to vector<32x96xbf16>
    %c1_74 = arith.constant 1 : index
    %c0_75 = arith.constant 0 : index
    %c0_76 = arith.constant 0 : index
    %219 = vector.load %arg5[%c1_74, %c0_75, %c0_76] : memref<2x1x96xf32, #tpu.memory_space<vmem>>, vector<1x1x96xf32>
    %220 = vector.shape_cast %219 : vector<1x1x96xf32> to vector<1x96xf32>
    %c1_77 = arith.constant 1 : index
    %c0_78 = arith.constant 0 : index
    %c0_79 = arith.constant 0 : index
    %221 = vector.load %arg6[%c1_77, %c0_78, %c0_79] : memref<2x32x32xbf16, #tpu.memory_space<vmem>>, vector<1x32x32xbf16>
    %222 = vector.shape_cast %221 : vector<1x32x32xbf16> to vector<32x32xbf16>
    %c1_80 = arith.constant 1 : index
    %c0_81 = arith.constant 0 : index
    %c0_82 = arith.constant 0 : index
    %223 = vector.load %arg7[%c1_80, %c0_81, %c0_82] : memref<2x6x32xf32, #tpu.memory_space<vmem>>, vector<1x6x32xf32>
    %224 = vector.shape_cast %223 : vector<1x6x32xf32> to vector<6x32xf32>
    %225 = vector.extract_strided_slice %224 {offsets = [0, 0], sizes = [1, 32], strides = [1, 1]} : vector<6x32xf32> to vector<1x32xf32>
    %226 = vector.extract_strided_slice %224 {offsets = [1, 0], sizes = [1, 32], strides = [1, 1]} : vector<6x32xf32> to vector<1x32xf32>
    %227 = vector.extract_strided_slice %224 {offsets = [2, 0], sizes = [1, 32], strides = [1, 1]} : vector<6x32xf32> to vector<1x32xf32>
    %228 = vector.extract_strided_slice %224 {offsets = [3, 0], sizes = [1, 32], strides = [1, 1]} : vector<6x32xf32> to vector<1x32xf32>
    %229 = vector.extract_strided_slice %224 {offsets = [4, 0], sizes = [1, 32], strides = [1, 1]} : vector<6x32xf32> to vector<1x32xf32>
    %230 = vector.extract_strided_slice %224 {offsets = [5, 0], sizes = [1, 32], strides = [1, 1]} : vector<6x32xf32> to vector<1x32xf32>
    %c1_83 = arith.constant 1 : index
    %c0_84 = arith.constant 0 : index
    %c0_85 = arith.constant 0 : index
    %231 = vector.load %arg8[%c1_83, %c0_84, %c0_85] : memref<2x32x64xbf16, #tpu.memory_space<vmem>>, vector<1x32x64xbf16>
    %232 = vector.shape_cast %231 : vector<1x32x64xbf16> to vector<32x64xbf16>
    %c1_86 = arith.constant 1 : index
    %c0_87 = arith.constant 0 : index
    %c0_88 = arith.constant 0 : index
    %233 = vector.load %arg9[%c1_86, %c0_87, %c0_88] : memref<2x1x64xf32, #tpu.memory_space<vmem>>, vector<1x1x64xf32>
    %234 = vector.shape_cast %233 : vector<1x1x64xf32> to vector<1x64xf32>
    %c1_89 = arith.constant 1 : index
    %c0_90 = arith.constant 0 : index
    %c0_91 = arith.constant 0 : index
    %235 = vector.load %arg10[%c1_89, %c0_90, %c0_91] : memref<2x64x32xbf16, #tpu.memory_space<vmem>>, vector<1x64x32xbf16>
    %236 = vector.shape_cast %235 : vector<1x64x32xbf16> to vector<64x32xbf16>
    %237 = arith.truncf %216 : vector<16x32xf32> to vector<16x32xbf16>
    %cst_92 = arith.constant dense<0.000000e+00> : vector<16x96xf32>
    %238 = tpu.matmul %237, %218, %cst_92 {dimension_numbers = #tpu.dot_dimension_numbers<[1], [0], [0], [1], [0, 0, 1, 1], [], []>} : vector<16x32xbf16>, vector<32x96xbf16>, vector<16x96xf32> -> vector<16x96xf32>
    %239 = vector.broadcast %220 : vector<1x96xf32> to vector<16x96xf32>
    %240 = arith.addf %238, %239 : vector<16x96xf32>
    %241 = vector.shape_cast %240 : vector<16x96xf32> to vector<2x8x96xf32>
    %242 = vector.extract_strided_slice %241 {offsets = [0, 0, 0], sizes = [2, 8, 32], strides = [1, 1, 1]} : vector<2x8x96xf32> to vector<2x8x32xf32>
    %243 = arith.truncf %242 : vector<2x8x32xf32> to vector<2x8x32xbf16>
    %244 = vector.extract_strided_slice %241 {offsets = [0, 0, 32], sizes = [2, 8, 32], strides = [1, 1, 1]} : vector<2x8x96xf32> to vector<2x8x32xf32>
    %245 = arith.truncf %244 : vector<2x8x32xf32> to vector<2x8x32xbf16>
    %246 = vector.extract_strided_slice %241 {offsets = [0, 0, 64], sizes = [2, 8, 32], strides = [1, 1, 1]} : vector<2x8x96xf32> to vector<2x8x32xf32>
    %247 = arith.truncf %246 : vector<2x8x32xf32> to vector<2x8x32xbf16>
    %248 = vector.extract_strided_slice %243 {offsets = [0, 0, 0], sizes = [2, 8, 8], strides = [1, 1, 1]} : vector<2x8x32xbf16> to vector<2x8x8xbf16>
    %249 = vector.extract_strided_slice %245 {offsets = [0, 0, 0], sizes = [2, 8, 8], strides = [1, 1, 1]} : vector<2x8x32xbf16> to vector<2x8x8xbf16>
    "tpu.trace_start"() <{level = 10 : i32, message = "bqd,bkd->bqk"}> : () -> ()
    %cst_93 = arith.constant dense<0.000000e+00> : vector<2x8x8xf32>
    %250 = tpu.matmul %248, %249, %cst_93 {dimension_numbers = #tpu.dot_dimension_numbers<[2], [2], [1], [1], [0, 0, 0, 1, 1, 1], [0], [0]>} : vector<2x8x8xbf16>, vector<2x8x8xbf16>, vector<2x8x8xf32> -> vector<2x8x8xf32>
    "tpu.trace_stop"() : () -> ()
    %251 = vector.broadcast %29 : vector<2x1x8xf32> to vector<2x8x8xf32>
    %252 = arith.addf %250, %251 : vector<2x8x8xf32>
    %cst_94 = arith.constant dense<0xFF800000> : vector<2x8xf32>
    %253 = vector.multi_reduction <maximumf>, %252, %cst_94 [2] : vector<2x8x8xf32> to vector<2x8xf32>
    %254 = vector.shape_cast %253 : vector<2x8xf32> to vector<2x8x1xf32>
    %255 = vector.broadcast %254 : vector<2x8x1xf32> to vector<2x8x8xf32>
    %256 = arith.subf %252, %255 : vector<2x8x8xf32>
    %257 = math.exp %256 : vector<2x8x8xf32>
    %cst_95 = arith.constant dense<0.000000e+00> : vector<2x8xf32>
    %258 = vector.multi_reduction <add>, %257, %cst_95 [2] : vector<2x8x8xf32> to vector<2x8xf32>
    %259 = vector.shape_cast %258 : vector<2x8xf32> to vector<2x8x1xf32>
    %260 = tpu.reciprocal %259 {approx = true} : vector<2x8x1xf32> -> vector<2x8x1xf32>
    %261 = vector.broadcast %260 : vector<2x8x1xf32> to vector<2x8x8xf32>
    %262 = arith.mulf %257, %261 : vector<2x8x8xf32>
    %263 = arith.truncf %262 : vector<2x8x8xf32> to vector<2x8x8xbf16>
    %264 = vector.extract_strided_slice %247 {offsets = [0, 0, 0], sizes = [2, 8, 8], strides = [1, 1, 1]} : vector<2x8x32xbf16> to vector<2x8x8xbf16>
    "tpu.trace_start"() <{level = 10 : i32, message = "bqk,bkd->bqd"}> : () -> ()
    %cst_96 = arith.constant dense<0.000000e+00> : vector<2x8x8xf32>
    %265 = tpu.matmul %263, %264, %cst_96 {dimension_numbers = #tpu.dot_dimension_numbers<[2], [1], [1], [2], [0, 0, 0, 1, 1, 2], [0], [0]>} : vector<2x8x8xbf16>, vector<2x8x8xbf16>, vector<2x8x8xf32> -> vector<2x8x8xf32>
    "tpu.trace_stop"() : () -> ()
    %266 = vector.shape_cast %265 : vector<2x8x8xf32> to vector<16x8xf32>
    %267 = arith.truncf %266 : vector<16x8xf32> to vector<16x8xbf16>
    %268 = vector.extract_strided_slice %222 {offsets = [0, 0], sizes = [8, 32], strides = [1, 1]} : vector<32x32xbf16> to vector<8x32xbf16>
    %cst_97 = arith.constant dense<0.000000e+00> : vector<16x32xf32>
    %269 = tpu.matmul %267, %268, %cst_97 {dimension_numbers = #tpu.dot_dimension_numbers<[1], [0], [0], [1], [0, 0, 1, 1], [], []>} : vector<16x8xbf16>, vector<8x32xbf16>, vector<16x32xf32> -> vector<16x32xf32>
    %270 = vector.extract_strided_slice %243 {offsets = [0, 0, 8], sizes = [2, 8, 8], strides = [1, 1, 1]} : vector<2x8x32xbf16> to vector<2x8x8xbf16>
    %271 = vector.extract_strided_slice %245 {offsets = [0, 0, 8], sizes = [2, 8, 8], strides = [1, 1, 1]} : vector<2x8x32xbf16> to vector<2x8x8xbf16>
    "tpu.trace_start"() <{level = 10 : i32, message = "bqd,bkd->bqk"}> : () -> ()
    %cst_98 = arith.constant dense<0.000000e+00> : vector<2x8x8xf32>
    %272 = tpu.matmul %270, %271, %cst_98 {dimension_numbers = #tpu.dot_dimension_numbers<[2], [2], [1], [1], [0, 0, 0, 1, 1, 1], [0], [0]>} : vector<2x8x8xbf16>, vector<2x8x8xbf16>, vector<2x8x8xf32> -> vector<2x8x8xf32>
    "tpu.trace_stop"() : () -> ()
    %273 = vector.broadcast %29 : vector<2x1x8xf32> to vector<2x8x8xf32>
    %274 = arith.addf %272, %273 : vector<2x8x8xf32>
    %cst_99 = arith.constant dense<0xFF800000> : vector<2x8xf32>
    %275 = vector.multi_reduction <maximumf>, %274, %cst_99 [2] : vector<2x8x8xf32> to vector<2x8xf32>
    %276 = vector.shape_cast %275 : vector<2x8xf32> to vector<2x8x1xf32>
    %277 = vector.broadcast %276 : vector<2x8x1xf32> to vector<2x8x8xf32>
    %278 = arith.subf %274, %277 : vector<2x8x8xf32>
    %279 = math.exp %278 : vector<2x8x8xf32>
    %cst_100 = arith.constant dense<0.000000e+00> : vector<2x8xf32>
    %280 = vector.multi_reduction <add>, %279, %cst_100 [2] : vector<2x8x8xf32> to vector<2x8xf32>
    %281 = vector.shape_cast %280 : vector<2x8xf32> to vector<2x8x1xf32>
    %282 = tpu.reciprocal %281 {approx = true} : vector<2x8x1xf32> -> vector<2x8x1xf32>
    %283 = vector.broadcast %282 : vector<2x8x1xf32> to vector<2x8x8xf32>
    %284 = arith.mulf %279, %283 : vector<2x8x8xf32>
    %285 = arith.truncf %284 : vector<2x8x8xf32> to vector<2x8x8xbf16>
    %286 = vector.extract_strided_slice %247 {offsets = [0, 0, 8], sizes = [2, 8, 8], strides = [1, 1, 1]} : vector<2x8x32xbf16> to vector<2x8x8xbf16>
    "tpu.trace_start"() <{level = 10 : i32, message = "bqk,bkd->bqd"}> : () -> ()
    %cst_101 = arith.constant dense<0.000000e+00> : vector<2x8x8xf32>
    %287 = tpu.matmul %285, %286, %cst_101 {dimension_numbers = #tpu.dot_dimension_numbers<[2], [1], [1], [2], [0, 0, 0, 1, 1, 2], [0], [0]>} : vector<2x8x8xbf16>, vector<2x8x8xbf16>, vector<2x8x8xf32> -> vector<2x8x8xf32>
    "tpu.trace_stop"() : () -> ()
    %288 = vector.shape_cast %287 : vector<2x8x8xf32> to vector<16x8xf32>
    %289 = arith.truncf %288 : vector<16x8xf32> to vector<16x8xbf16>
    %290 = vector.extract_strided_slice %222 {offsets = [8, 0], sizes = [8, 32], strides = [1, 1]} : vector<32x32xbf16> to vector<8x32xbf16>
    %cst_102 = arith.constant dense<0.000000e+00> : vector<16x32xf32>
    %291 = tpu.matmul %289, %290, %cst_102 {dimension_numbers = #tpu.dot_dimension_numbers<[1], [0], [0], [1], [0, 0, 1, 1], [], []>} : vector<16x8xbf16>, vector<8x32xbf16>, vector<16x32xf32> -> vector<16x32xf32>
    %292 = vector.extract_strided_slice %243 {offsets = [0, 0, 16], sizes = [2, 8, 8], strides = [1, 1, 1]} : vector<2x8x32xbf16> to vector<2x8x8xbf16>
    %293 = vector.extract_strided_slice %245 {offsets = [0, 0, 16], sizes = [2, 8, 8], strides = [1, 1, 1]} : vector<2x8x32xbf16> to vector<2x8x8xbf16>
    "tpu.trace_start"() <{level = 10 : i32, message = "bqd,bkd->bqk"}> : () -> ()
    %cst_103 = arith.constant dense<0.000000e+00> : vector<2x8x8xf32>
    %294 = tpu.matmul %292, %293, %cst_103 {dimension_numbers = #tpu.dot_dimension_numbers<[2], [2], [1], [1], [0, 0, 0, 1, 1, 1], [0], [0]>} : vector<2x8x8xbf16>, vector<2x8x8xbf16>, vector<2x8x8xf32> -> vector<2x8x8xf32>
    "tpu.trace_stop"() : () -> ()
    %295 = vector.broadcast %29 : vector<2x1x8xf32> to vector<2x8x8xf32>
    %296 = arith.addf %294, %295 : vector<2x8x8xf32>
    %cst_104 = arith.constant dense<0xFF800000> : vector<2x8xf32>
    %297 = vector.multi_reduction <maximumf>, %296, %cst_104 [2] : vector<2x8x8xf32> to vector<2x8xf32>
    %298 = vector.shape_cast %297 : vector<2x8xf32> to vector<2x8x1xf32>
    %299 = vector.broadcast %298 : vector<2x8x1xf32> to vector<2x8x8xf32>
    %300 = arith.subf %296, %299 : vector<2x8x8xf32>
    %301 = math.exp %300 : vector<2x8x8xf32>
    %cst_105 = arith.constant dense<0.000000e+00> : vector<2x8xf32>
    %302 = vector.multi_reduction <add>, %301, %cst_105 [2] : vector<2x8x8xf32> to vector<2x8xf32>
    %303 = vector.shape_cast %302 : vector<2x8xf32> to vector<2x8x1xf32>
    %304 = tpu.reciprocal %303 {approx = true} : vector<2x8x1xf32> -> vector<2x8x1xf32>
    %305 = vector.broadcast %304 : vector<2x8x1xf32> to vector<2x8x8xf32>
    %306 = arith.mulf %301, %305 : vector<2x8x8xf32>
    %307 = arith.truncf %306 : vector<2x8x8xf32> to vector<2x8x8xbf16>
    %308 = vector.extract_strided_slice %247 {offsets = [0, 0, 16], sizes = [2, 8, 8], strides = [1, 1, 1]} : vector<2x8x32xbf16> to vector<2x8x8xbf16>
    "tpu.trace_start"() <{level = 10 : i32, message = "bqk,bkd->bqd"}> : () -> ()
    %cst_106 = arith.constant dense<0.000000e+00> : vector<2x8x8xf32>
    %309 = tpu.matmul %307, %308, %cst_106 {dimension_numbers = #tpu.dot_dimension_numbers<[2], [1], [1], [2], [0, 0, 0, 1, 1, 2], [0], [0]>} : vector<2x8x8xbf16>, vector<2x8x8xbf16>, vector<2x8x8xf32> -> vector<2x8x8xf32>
    "tpu.trace_stop"() : () -> ()
    %310 = vector.shape_cast %309 : vector<2x8x8xf32> to vector<16x8xf32>
    %311 = arith.truncf %310 : vector<16x8xf32> to vector<16x8xbf16>
    %312 = vector.extract_strided_slice %222 {offsets = [16, 0], sizes = [8, 32], strides = [1, 1]} : vector<32x32xbf16> to vector<8x32xbf16>
    %cst_107 = arith.constant dense<0.000000e+00> : vector<16x32xf32>
    %313 = tpu.matmul %311, %312, %cst_107 {dimension_numbers = #tpu.dot_dimension_numbers<[1], [0], [0], [1], [0, 0, 1, 1], [], []>} : vector<16x8xbf16>, vector<8x32xbf16>, vector<16x32xf32> -> vector<16x32xf32>
    %314 = vector.extract_strided_slice %243 {offsets = [0, 0, 24], sizes = [2, 8, 8], strides = [1, 1, 1]} : vector<2x8x32xbf16> to vector<2x8x8xbf16>
    %315 = vector.extract_strided_slice %245 {offsets = [0, 0, 24], sizes = [2, 8, 8], strides = [1, 1, 1]} : vector<2x8x32xbf16> to vector<2x8x8xbf16>
    "tpu.trace_start"() <{level = 10 : i32, message = "bqd,bkd->bqk"}> : () -> ()
    %cst_108 = arith.constant dense<0.000000e+00> : vector<2x8x8xf32>
    %316 = tpu.matmul %314, %315, %cst_108 {dimension_numbers = #tpu.dot_dimension_numbers<[2], [2], [1], [1], [0, 0, 0, 1, 1, 1], [0], [0]>} : vector<2x8x8xbf16>, vector<2x8x8xbf16>, vector<2x8x8xf32> -> vector<2x8x8xf32>
    "tpu.trace_stop"() : () -> ()
    %317 = vector.broadcast %29 : vector<2x1x8xf32> to vector<2x8x8xf32>
    %318 = arith.addf %316, %317 : vector<2x8x8xf32>
    %cst_109 = arith.constant dense<0xFF800000> : vector<2x8xf32>
    %319 = vector.multi_reduction <maximumf>, %318, %cst_109 [2] : vector<2x8x8xf32> to vector<2x8xf32>
    %320 = vector.shape_cast %319 : vector<2x8xf32> to vector<2x8x1xf32>
    %321 = vector.broadcast %320 : vector<2x8x1xf32> to vector<2x8x8xf32>
    %322 = arith.subf %318, %321 : vector<2x8x8xf32>
    %323 = math.exp %322 : vector<2x8x8xf32>
    %cst_110 = arith.constant dense<0.000000e+00> : vector<2x8xf32>
    %324 = vector.multi_reduction <add>, %323, %cst_110 [2] : vector<2x8x8xf32> to vector<2x8xf32>
    %325 = vector.shape_cast %324 : vector<2x8xf32> to vector<2x8x1xf32>
    %326 = tpu.reciprocal %325 {approx = true} : vector<2x8x1xf32> -> vector<2x8x1xf32>
    %327 = vector.broadcast %326 : vector<2x8x1xf32> to vector<2x8x8xf32>
    %328 = arith.mulf %323, %327 : vector<2x8x8xf32>
    %329 = arith.truncf %328 : vector<2x8x8xf32> to vector<2x8x8xbf16>
    %330 = vector.extract_strided_slice %247 {offsets = [0, 0, 24], sizes = [2, 8, 8], strides = [1, 1, 1]} : vector<2x8x32xbf16> to vector<2x8x8xbf16>
    "tpu.trace_start"() <{level = 10 : i32, message = "bqk,bkd->bqd"}> : () -> ()
    %cst_111 = arith.constant dense<0.000000e+00> : vector<2x8x8xf32>
    %331 = tpu.matmul %329, %330, %cst_111 {dimension_numbers = #tpu.dot_dimension_numbers<[2], [1], [1], [2], [0, 0, 0, 1, 1, 2], [0], [0]>} : vector<2x8x8xbf16>, vector<2x8x8xbf16>, vector<2x8x8xf32> -> vector<2x8x8xf32>
    "tpu.trace_stop"() : () -> ()
    %332 = vector.shape_cast %331 : vector<2x8x8xf32> to vector<16x8xf32>
    %333 = arith.truncf %332 : vector<16x8xf32> to vector<16x8xbf16>
    %334 = vector.extract_strided_slice %222 {offsets = [24, 0], sizes = [8, 32], strides = [1, 1]} : vector<32x32xbf16> to vector<8x32xbf16>
    %cst_112 = arith.constant dense<0.000000e+00> : vector<16x32xf32>
    %335 = tpu.matmul %333, %334, %cst_112 {dimension_numbers = #tpu.dot_dimension_numbers<[1], [0], [0], [1], [0, 0, 1, 1], [], []>} : vector<16x8xbf16>, vector<8x32xbf16>, vector<16x32xf32> -> vector<16x32xf32>
    %336 = arith.addf %269, %291 : vector<16x32xf32>
    %337 = arith.addf %336, %313 : vector<16x32xf32>
    %338 = arith.addf %337, %335 : vector<16x32xf32>
    %339 = vector.broadcast %225 : vector<1x32xf32> to vector<16x32xf32>
    %340 = arith.addf %338, %339 : vector<16x32xf32>
    %341 = arith.addf %216, %340 : vector<16x32xf32>
    %cst_113 = arith.constant dense<0.000000e+00> : vector<16xf32>
    %342 = vector.multi_reduction <add>, %341, %cst_113 [1] : vector<16x32xf32> to vector<16xf32>
    %343 = vector.shape_cast %342 : vector<16xf32> to vector<16x1xf32>
    %cst_114 = arith.constant 3.200000e+01 : f32
    %344 = vector.broadcast %cst_114 : f32 to vector<16x1xf32>
    %345 = arith.divf %343, %344 : vector<16x1xf32>
    %346 = vector.broadcast %345 : vector<16x1xf32> to vector<16x32xf32>
    %347 = arith.subf %341, %346 : vector<16x32xf32>
    %348 = arith.mulf %347, %347 : vector<16x32xf32>
    %cst_115 = arith.constant dense<0.000000e+00> : vector<16xf32>
    %349 = vector.multi_reduction <add>, %348, %cst_115 [1] : vector<16x32xf32> to vector<16xf32>
    %350 = vector.shape_cast %349 : vector<16xf32> to vector<16x1xf32>
    %cst_116 = arith.constant 3.200000e+01 : f32
    %351 = vector.broadcast %cst_116 : f32 to vector<16x1xf32>
    %352 = arith.divf %350, %351 : vector<16x1xf32>
    %cst_117 = arith.constant 9.99999996E-13 : f32
    %353 = vector.broadcast %cst_117 : f32 to vector<16x1xf32>
    %354 = arith.addf %352, %353 : vector<16x1xf32>
    %355 = math.rsqrt %354 : vector<16x1xf32>
    %356 = vector.broadcast %355 : vector<16x1xf32> to vector<16x32xf32>
    %357 = arith.mulf %347, %356 : vector<16x32xf32>
    %358 = vector.broadcast %226 : vector<1x32xf32> to vector<16x32xf32>
    %359 = arith.mulf %357, %358 : vector<16x32xf32>
    %360 = vector.broadcast %227 : vector<1x32xf32> to vector<16x32xf32>
    %361 = arith.addf %359, %360 : vector<16x32xf32>
    %362 = arith.truncf %361 : vector<16x32xf32> to vector<16x32xbf16>
    %cst_118 = arith.constant dense<0.000000e+00> : vector<16x64xf32>
    %363 = tpu.matmul %362, %232, %cst_118 {dimension_numbers = #tpu.dot_dimension_numbers<[1], [0], [0], [1], [0, 0, 1, 1], [], []>} : vector<16x32xbf16>, vector<32x64xbf16>, vector<16x64xf32> -> vector<16x64xf32>
    %364 = vector.broadcast %234 : vector<1x64xf32> to vector<16x64xf32>
    %365 = arith.addf %363, %364 : vector<16x64xf32>
    %366 = arith.mulf %365, %365 : vector<16x64xf32>
    %367 = arith.mulf %365, %366 : vector<16x64xf32>
    %cst_119 = arith.constant 4.471500e-02 : f32
    %368 = vector.broadcast %cst_119 : f32 to vector<16x64xf32>
    %369 = arith.mulf %368, %367 : vector<16x64xf32>
    %370 = arith.addf %365, %369 : vector<16x64xf32>
    %cst_120 = arith.constant 0.797884583 : f32
    %371 = vector.broadcast %cst_120 : f32 to vector<16x64xf32>
    %372 = arith.mulf %371, %370 : vector<16x64xf32>
    %373 = math.tanh %372 : vector<16x64xf32>
    %cst_121 = arith.constant 1.000000e+00 : f32
    %374 = vector.broadcast %cst_121 : f32 to vector<16x64xf32>
    %375 = arith.addf %374, %373 : vector<16x64xf32>
    %cst_122 = arith.constant 5.000000e-01 : f32
    %376 = vector.broadcast %cst_122 : f32 to vector<16x64xf32>
    %377 = arith.mulf %376, %375 : vector<16x64xf32>
    %378 = arith.mulf %365, %377 : vector<16x64xf32>
    %379 = arith.truncf %378 : vector<16x64xf32> to vector<16x64xbf16>
    %cst_123 = arith.constant dense<0.000000e+00> : vector<16x32xf32>
    %380 = tpu.matmul %379, %236, %cst_123 {dimension_numbers = #tpu.dot_dimension_numbers<[1], [0], [0], [1], [0, 0, 1, 1], [], []>} : vector<16x64xbf16>, vector<64x32xbf16>, vector<16x32xf32> -> vector<16x32xf32>
    %381 = vector.broadcast %230 : vector<1x32xf32> to vector<16x32xf32>
    %382 = arith.addf %380, %381 : vector<16x32xf32>
    %383 = arith.addf %361, %382 : vector<16x32xf32>
    %cst_124 = arith.constant dense<0.000000e+00> : vector<16xf32>
    %384 = vector.multi_reduction <add>, %383, %cst_124 [1] : vector<16x32xf32> to vector<16xf32>
    %385 = vector.shape_cast %384 : vector<16xf32> to vector<16x1xf32>
    %cst_125 = arith.constant 3.200000e+01 : f32
    %386 = vector.broadcast %cst_125 : f32 to vector<16x1xf32>
    %387 = arith.divf %385, %386 : vector<16x1xf32>
    %388 = vector.broadcast %387 : vector<16x1xf32> to vector<16x32xf32>
    %389 = arith.subf %383, %388 : vector<16x32xf32>
    %390 = arith.mulf %389, %389 : vector<16x32xf32>
    %cst_126 = arith.constant dense<0.000000e+00> : vector<16xf32>
    %391 = vector.multi_reduction <add>, %390, %cst_126 [1] : vector<16x32xf32> to vector<16xf32>
    %392 = vector.shape_cast %391 : vector<16xf32> to vector<16x1xf32>
    %cst_127 = arith.constant 3.200000e+01 : f32
    %393 = vector.broadcast %cst_127 : f32 to vector<16x1xf32>
    %394 = arith.divf %392, %393 : vector<16x1xf32>
    %cst_128 = arith.constant 9.99999996E-13 : f32
    %395 = vector.broadcast %cst_128 : f32 to vector<16x1xf32>
    %396 = arith.addf %394, %395 : vector<16x1xf32>
    %397 = math.rsqrt %396 : vector<16x1xf32>
    %398 = vector.broadcast %397 : vector<16x1xf32> to vector<16x32xf32>
    %399 = arith.mulf %389, %398 : vector<16x32xf32>
    %400 = vector.broadcast %228 : vector<1x32xf32> to vector<16x32xf32>
    %401 = arith.mulf %399, %400 : vector<16x32xf32>
    %402 = vector.broadcast %229 : vector<1x32xf32> to vector<16x32xf32>
    %403 = arith.addf %401, %402 : vector<16x32xf32>
    %404 = vector.shape_cast %403 : vector<16x32xf32> to vector<2x8x32xf32>
    %405 = vector.extract_strided_slice %404 {offsets = [0, 0, 0], sizes = [2, 1, 32], strides = [1, 1, 1]} : vector<2x8x32xf32> to vector<2x1x32xf32>
    %406 = vector.shape_cast %405 : vector<2x1x32xf32> to vector<2x32xf32>
    %c0_129 = arith.constant 0 : index
    %c0_130 = arith.constant 0 : index
    %407 = vector.load %arg2[%c0_129, %c0_130] : memref<2x32xf32, #tpu.memory_space<vmem>>, vector<2x32xf32>
    %408 = arith.addf %406, %407 : vector<2x32xf32>
    %c0_131 = arith.constant 0 : index
    %c0_132 = arith.constant 0 : index
    %409 = vector.load %arg11[%c0_131, %c0_132] : memref<2x32xf32, #tpu.memory_space<vmem>>, vector<2x32xf32>
    tpu.vector_store %arg11[%c0_131, %c0_132], %408 {strides = array<i32>} : memref<2x32xf32, #tpu.memory_space<vmem>>, vector<2x32xf32>,
    return
  }
}

</mosaic_0001>

<llo_original>
// kernel: base_bert_forward.1
$region0: #{base_bert_forward.1}
  #allocation0 [shape = 'u32[]', space=smem, size = 0x4, offset = 0x4, fixed_abs, tag = 'smem constant byte address 0x4 - core index']
  #allocation1 [shape = 'u32[72,128]{1,0:T(1,128)}', space=vmem, size = 0x9000, scoped, tag = 'internal scratch']
  %s0 = inlined_call_operand.vmem [shape: f32[2,8,32], index: 0, kind: input, shape index: {}]
  %s1 = inlined_call_operand.vmem [shape: f32[2,8], index: 1, kind: input, shape index: {}]
  %s2 = inlined_call_operand.vmem [shape: f32[2,32], index: 2, kind: input, shape index: {}]
  %s3 = inlined_call_operand.vmem [shape: f32[2,32], index: 3, kind: input, shape index: {}]
  %s4 = inlined_call_operand.vmem [shape: bf16[2,32,96], index: 4, kind: input, shape index: {}]
  %s5 = inlined_call_operand.vmem [shape: f32[2,1,96], index: 5, kind: input, shape index: {}]
  %s6 = inlined_call_operand.vmem [shape: bf16[2,32,32], index: 6, kind: input, shape index: {}]
  %s7 = inlined_call_operand.vmem [shape: f32[2,6,32], index: 7, kind: input, shape index: {}]
  %s8 = inlined_call_operand.vmem [shape: bf16[2,32,64], index: 8, kind: input, shape index: {}]
  %s9 = inlined_call_operand.vmem [shape: f32[2,1,64], index: 9, kind: input, shape index: {}]
  %s10 = inlined_call_operand.vmem [shape: bf16[2,64,32], index: 10, kind: input, shape index: {}]
  %s11 = inlined_call_operand.hbm [shape: f32[2,32], index: 11, kind: output, shape index: {}]
  %s12 = sld [smem:[#allocation0]]
  $region54: #{base_bert_forward.1} parent=0
    _
  %s14 = ssub.s32 1, %s12
  %s15 = scalar_select 0, %s14, %s12
  $region1: #{base_bert_forward.1} parent=0
    #allocation2 [shape = 'u8[1024]{0}', space=vmem, size = 0x400, scoped, tag = 'output window, operand 0, single buffered']
    #allocation3 [shape = 's32[1]{0}', space=sflag, size = 0x4, scoped, tag = 'scoped memory for base_bert_forward.1']
    %16 = vsyncpa [#allocation3], 0
    // Predicated region
    $region2: #{base_bert_forward.1} parent=1 // pred_check
      _
    $region3: #{base_bert_forward.1} parent=1 // pred_check_branch
      %18 = sbr.rel (0) target = $region5
    $region4: #{base_bert_forward.1} parent=1 // pred_region
      _
    $region5: #{base_bert_forward.1} parent=1 // pred_fallthru
      _
    // Predicated region
    $region6: #{base_bert_forward.1} parent=1 // pred_check
      _
    $region7: #{base_bert_forward.1} parent=1 // pred_check_branch
      %20 = sbr.rel (0) target = $region9
    $region8: #{base_bert_forward.1} parent=1 // pred_region
      _
    $region9: #{base_bert_forward.1} parent=1 // pred_fallthru
      _
    // Predicated region
    $region10: #{base_bert_forward.1} parent=1 // pred_check
      _
    $region11: #{base_bert_forward.1} parent=1 // pred_check_branch
      %22 = sbr.rel (0) target = $region13
    $region12: #{base_bert_forward.1} parent=1 // pred_region
      _
    $region13: #{base_bert_forward.1} parent=1 // pred_fallthru
      _
    // Predicated region
    $region14: #{base_bert_forward.1} parent=1 // pred_check
      _
    $region15: #{base_bert_forward.1} parent=1 // pred_check_branch
      %24 = sbr.rel (0) target = $region17
    $region16: #{base_bert_forward.1} parent=1 // pred_region
      _
    $region17: #{base_bert_forward.1} parent=1 // pred_fallthru
      _
    // Predicated region
    $region18: #{base_bert_forward.1} parent=1 // pred_check
      _
    $region19: #{base_bert_forward.1} parent=1 // pred_check_branch
      %26 = sbr.rel (0) target = $region21
    $region20: #{base_bert_forward.1} parent=1 // pred_region
      _
    $region21: #{base_bert_forward.1} parent=1 // pred_fallthru
      _
    // Predicated region
    $region22: #{base_bert_forward.1} parent=1 // pred_check
      _
    $region23: #{base_bert_forward.1} parent=1 // pred_check_branch
      %28 = sbr.rel (0) target = $region25
    $region24: #{base_bert_forward.1} parent=1 // pred_region
      _
    $region25: #{base_bert_forward.1} parent=1 // pred_fallthru
      _
    // Predicated region
    $region26: #{base_bert_forward.1} parent=1 // pred_check
      _
    $region27: #{base_bert_forward.1} parent=1 // pred_check_branch
      %30 = sbr.rel (0) target = $region29
    $region28: #{base_bert_forward.1} parent=1 // pred_region
      _
    $region29: #{base_bert_forward.1} parent=1 // pred_fallthru
      _
    // Predicated region
    $region30: #{base_bert_forward.1} parent=1 // pred_check
      _
    $region31: #{base_bert_forward.1} parent=1 // pred_check_branch
      %32 = sbr.rel (0) target = $region33
    $region32: #{base_bert_forward.1} parent=1 // pred_region
      _
    $region33: #{base_bert_forward.1} parent=1 // pred_fallthru
      _
    // Predicated region
    $region34: #{base_bert_forward.1} parent=1 // pred_check
      _
    $region35: #{base_bert_forward.1} parent=1 // pred_check_branch
      %34 = sbr.rel (0) target = $region37
    $region36: #{base_bert_forward.1} parent=1 // pred_region
      _
    $region37: #{base_bert_forward.1} parent=1 // pred_fallthru
      _
    // Predicated region
    $region38: #{base_bert_forward.1} parent=1 // pred_check
      _
    $region39: #{base_bert_forward.1} parent=1 // pred_check_branch
      %36 = sbr.rel (0) target = $region41
    $region40: #{base_bert_forward.1} parent=1 // pred_region
      _
    $region41: #{base_bert_forward.1} parent=1 // pred_fallthru
      _
    // Predicated region
    $region42: #{base_bert_forward.1} parent=1 // pred_check
      _
    $region43: #{base_bert_forward.1} parent=1 // pred_check_branch
      %38 = sbr.rel (0) target = $region45
    $region44: #{base_bert_forward.1} parent=1 // pred_region
      _
    $region45: #{base_bert_forward.1} parent=1 // pred_fallthru
      _
    %v40 = vld [vmem:[%s0] sm:$0xff]
    %v41 = vld [vmem:[%s0 + $0x8] sm:$0xff]
    %v42 = vld [vmem:[%s3] sm:$0x1]
    %v43 = vld [vmem:[%s3 + $0x1] sm:$0x1]
    %vm44 = vcmask 261120
    %v45 = vsel %vm44, %v40, 0.0
    %46 = vadd.xlane.f32.xlu0 %v45
    %v47 = vpop.xlane.xlu0 %46
    %v48 = vsel %vm44, %v41, 0.0
    %49 = vadd.xlane.f32.xlu0 %v48
    %v50 = vpop.xlane.xlu0 %49
    %v51 = vrcp.pop 32.0
    %v52 = vmul.f32 32.0, %v51
    %v53 = vsub.f32 1.0, %v52
    %v54 = vmul.f32 %v51, %v53
    %v55 = vadd.f32 %v51, %v54
    %vm56 = vweird.f32 %v51
    %v57 = vsel %vm56, %v51, %v55
    %v58 = vmul.f32 %v47, %v57
    %v59 = vmul.f32 %v50, %v57
    %v60 = vsub.f32 %v40, %v58
    %v61 = vsub.f32 %v41, %v59
    %v62 = vmul.f32 %v60, %v60
    %v63 = vmul.f32 %v61, %v61
    %v64 = vsel %vm44, %v62, 0.0
    %65 = vadd.xlane.f32.xlu0 %v64
    %v66 = vpop.xlane.xlu0 %65
    %v67 = vsel %vm44, %v63, 0.0
    %68 = vadd.xlane.f32.xlu0 %v67
    %v69 = vpop.xlane.xlu0 %68
    %v70 = vmul.f32 %v66, %v57
    %v71 = vmul.f32 %v69, %v57
    %v72 = vadd.f32 %v70, 1e-12
    %v73 = vadd.f32 %v71, 1e-12
    %v74 = vrsqrt.pop %v72
    %v75 = vmul.f32 %v74, %v72
    %v76 = vmul.f32 %v75, %v74
    %v77 = vmul.f32 0.5, %v76
    %v78 = vsub.f32 1.5, %v77
    %v79 = vmul.f32 %v74, %v78
    %vm80 = vweird.f32 %v72
    %vm81 = vweird.f32 %v74
    %vm82 = vmor %vm80, %vm81
    %v83 = vsel %vm82, %v74, %v79
    %v84 = vrsqrt.pop %v73
    %v85 = vmul.f32 %v84, %v73
    %v86 = vmul.f32 %v85, %v84
    %v87 = vmul.f32 0.5, %v86
    %v88 = vsub.f32 1.5, %v87
    %v89 = vmul.f32 %v84, %v88
    %vm90 = vweird.f32 %v73
    %vm91 = vweird.f32 %v84
    %vm92 = vmor %vm90, %vm91
    %v93 = vsel %vm92, %v84, %v89
    %v94 = vmul.f32 %v60, %v83
    %v95 = vmul.f32 %v61, %v93
    %v96 = vperm.slane %v42, 0
    %v97 = vmul.f32 %v94, %v96
    %v98 = vmul.f32 %v95, %v96
    %v99 = vperm.slane %v43, 0
    %v100 = vadd.f32 %v97, %v99
    %v101 = vadd.f32 %v98, %v99
    %v102 = vld [vmem:[%s1] sm:$0x3]
    %v103 = vsub.f32 1.0, %v102
    %v104 = vmul.f32 %v103, -1e+09
    %v106 = vrot.slane %v104, 1
    %v107 = vld [vmem:[%s4] sm:$0xf]
    %v108 = vld [vmem:[%s4 + $0x4] sm:$0xf]
    %v109 = vld [vmem:[%s4 + $0x8] sm:$0xf]
    %v110 = vld [vmem:[%s4 + $0xc] sm:$0xf]
    %v111 = vld [vmem:[%s5] sm:$0x1]
    %v112 = vld [vmem:[%s6] sm:$0xf]
    %v113 = vld [vmem:[%s6 + $0x4] sm:$0xf]
    %v114 = vld [vmem:[%s6 + $0x8] sm:$0xf]
    %v115 = vld [vmem:[%s6 + $0xc] sm:$0xf]
    %v116 = vld [vmem:[%s7] sm:$0x3f]
    %v117 = vld [vmem:[%s8] sm:$0xf]
    %v118 = vld [vmem:[%s8 + $0x4] sm:$0xf]
    %v119 = vld [vmem:[%s8 + $0x8] sm:$0xf]
    %v120 = vld [vmem:[%s8 + $0xc] sm:$0xf]
    %v121 = vld [vmem:[%s9] sm:$0x1]
    %v122 = vld [vmem:[%s10] sm:$0xf]
    %v123 = vld [vmem:[%s10 + $0x4] sm:$0xf]
    %v124 = vld [vmem:[%s10 + $0x8] sm:$0xf]
    %v125 = vld [vmem:[%s10 + $0xc] sm:$0xf]
    %v126 = vld [vmem:[%s10 + $0x10] sm:$0xf]
    %v127 = vld [vmem:[%s10 + $0x14] sm:$0xf]
    %v128 = vld [vmem:[%s10 + $0x18] sm:$0xf]
    %v129 = vld [vmem:[%s10 + $0x1c] sm:$0xf]
    %v130 = vpack.c.bf16 %v101, %v100
    %v132 = vperm.slane %v111, 0
    %v138 = vunpack.c.l.b16 %v107
    %v139 = vunpack.c.l.b16 %v108
    %v140 = vunpack.c.l.b16 %v109
    %v141 = vunpack.c.l.b16 %v110
    %v142 = vpack.c.b16 %v139, %v138
    %v143 = vpack.c.b16 %v141, %v140
    %v147 = vsel %vm44, %v130, 0
    %149 = vmatpush.bf16.msra.mxu0 0
    %150 = vmatpush.bf16.msra.mxu0 0
    %151 = vmatpush.bf16.msra.mxu0 0
    %152 = vmatpush.bf16.msra.mxu0 0
    %153 = vmatpush.bf16.msra.mxu0 0
    %154 = vmatpush.bf16.msra.mxu0 0
    %155 = vmatpush.bf16.msra.mxu0 %v143
    %156 = vmatpush.bf16.msra.mxu0 %v142
    %157 = vmatmul.bf16.gmra.mxu0 %v147
    %v158 = vpop.f32.mrf.mxu0
    %v159 = vadd.f32 %v132, %v158
    %v160 = vpop.f32.mrf.mxu0
    %v161 = vadd.f32 %v132, %v160
    %162 = vdwg.mxu0
    %v163 = vpack.c.bf16 %v159, %v159
    %v164 = vpack.c.bf16 %v161, %v161
    %v165 = vperm.slane %v104, 0
    %v166 = vperm.slane %v106, 0
    %v170 = vunpack.c.l.b16 %v163
    %v171 = vpack.c.b16 %v170, %v170
    %172 = vrot.lane.b32.xlu0 %v171, 96
    %v173 = vpop.permute.xlu0 %172
    %vm174 = vcmask 64512
    %v176 = vsel %vm174, %v163, 0
    %v179 = vsel %vm174, %v173, 0
    %181 = vmatpush.bf16.xpose.msra.mxu0 0
    %182 = vmatpush.bf16.xpose.msra.mxu0 0
    %183 = vmatpush.bf16.xpose.msra.mxu0 0
    %184 = vmatpush.bf16.xpose.msra.mxu0 0
    %185 = vmatpush.bf16.xpose.msra.mxu0 0
    %186 = vmatpush.bf16.xpose.msra.mxu0 0
    %187 = vmatpush.bf16.xpose.msra.mxu0 0
    %188 = vmatpush.bf16.xpose.msra.mxu0 %v179
    %189 = vmatmul.bf16.gmra.mxu0 %v176
    %v190 = vpop.f32.mrf.mxu0
    %v191 = vadd.f32 %v165, %v190
    %v192 = vpop.f32.mrf.mxu0
    %193 = vdwg.mxu0
    %v195 = vunpack.c.l.b16 %v164
    %v196 = vpack.c.b16 %v195, %v195
    %197 = vrot.lane.b32.xlu0 %v196, 96
    %v198 = vpop.permute.xlu0 %197
    %v200 = vsel %vm174, %v164, 0
    %v203 = vsel %vm174, %v198, 0
    %205 = vmatpush.bf16.xpose.msra.mxu0 0
    %206 = vmatpush.bf16.xpose.msra.mxu0 0
    %207 = vmatpush.bf16.xpose.msra.mxu0 0
    %208 = vmatpush.bf16.xpose.msra.mxu0 0
    %209 = vmatpush.bf16.xpose.msra.mxu0 0
    %210 = vmatpush.bf16.xpose.msra.mxu0 0
    %211 = vmatpush.bf16.xpose.msra.mxu0 0
    %212 = vmatpush.bf16.xpose.msra.mxu0 %v203
    %213 = vmatmul.bf16.gmra.mxu0 %v200
    %v214 = vpop.f32.mrf.mxu0
    %v215 = vadd.f32 %v166, %v214
    %v216 = vpop.f32.mrf.mxu0
    %217 = vdwg.mxu0
    %v218 = vsel %vm174, %v191, -inf
    %219 = vmax.xlane.f32.xlu0 %v218
    %v220 = vpop.xlane.xlu0 %219
    %v221 = vsel %vm174, %v215, -inf
    %222 = vmax.xlane.f32.xlu0 %v221
    %v223 = vpop.xlane.xlu0 %222
    %v224 = vsub.f32 %v191, %v220
    %v225 = vsub.f32 %v215, %v223
    %v226 = vmul.f32 %v224, 1.442695
    %v227 = vpow.pop %v226
    %v228 = vmul.f32 %v225, 1.442695
    %v229 = vpow.pop %v228
    %v230 = vsel %vm174, %v227, 0.0
    %231 = vadd.xlane.f32.xlu0 %v230
    %v232 = vpop.xlane.xlu0 %231
    %v233 = vsel %vm174, %v229, 0.0
    %234 = vadd.xlane.f32.xlu0 %v233
    %v235 = vpop.xlane.xlu0 %234
    %v236 = vrcp.pop %v232
    %v237 = vrcp.pop %v235
    %v238 = vmul.f32 %v227, %v236
    %v239 = vmul.f32 %v229, %v237
    %v240 = vpack.c.bf16 %v238, %v238
    %v241 = vpack.c.bf16 %v239, %v239
    %242 = vrot.lane.b32.xlu0 %v171, 64
    %v243 = vpop.permute.xlu0 %242
    %v245 = vsel %vm174, %v240, 0
    %vm247 = vcmask 1043456
    %v249 = vsel %vm247, %v243, 0
    %251 = vmatpush.bf16.msra.mxu0 0
    %252 = vmatpush.bf16.msra.mxu0 0
    %253 = vmatpush.bf16.msra.mxu0 0
    %254 = vmatpush.bf16.msra.mxu0 0
    %255 = vmatpush.bf16.msra.mxu0 0
    %256 = vmatpush.bf16.msra.mxu0 0
    %257 = vmatpush.bf16.msra.mxu0 0
    %258 = vmatpush.bf16.msra.mxu0 %v249
    %259 = vmatmul.bf16.gmra.mxu0 %v245
    %v260 = vpop.f32.mrf.mxu0
    %v261 = vadd.f32 0.0, %v260
    %v262 = vpop.f32.mrf.mxu0
    %263 = vdwg.mxu0
    %264 = vrot.lane.b32.xlu0 %v196, 64
    %v265 = vpop.permute.xlu0 %264
    %v267 = vsel %vm174, %v241, 0
    %v270 = vsel %vm247, %v265, 0
    %272 = vmatpush.bf16.msra.mxu0 0
    %273 = vmatpush.bf16.msra.mxu0 0
    %274 = vmatpush.bf16.msra.mxu0 0
    %275 = vmatpush.bf16.msra.mxu0 0
    %276 = vmatpush.bf16.msra.mxu0 0
    %277 = vmatpush.bf16.msra.mxu0 0
    %278 = vmatpush.bf16.msra.mxu0 0
    %279 = vmatpush.bf16.msra.mxu0 %v270
    %280 = vmatmul.bf16.gmra.mxu0 %v267
    %v281 = vpop.f32.mrf.mxu0
    %v282 = vadd.f32 0.0, %v281
    %v283 = vpop.f32.mrf.mxu0
    %284 = vdwg.mxu0
    %v285 = vpack.c.bf16 %v282, %v261
    %286 = vrot.lane.b32.xlu0 %v171, 120
    %v287 = vpop.permute.xlu0 %286
    %288 = vrot.lane.b32.xlu0 %v171, 88
    %v289 = vpop.permute.xlu0 %288
    %v291 = vsel %vm174, %v287, 0
    %v294 = vsel %vm174, %v289, 0
    %296 = vmatpush.bf16.xpose.msra.mxu0 0
    %297 = vmatpush.bf16.xpose.msra.mxu0 0
    %298 = vmatpush.bf16.xpose.msra.mxu0 0
    %299 = vmatpush.bf16.xpose.msra.mxu0 0
    %300 = vmatpush.bf16.xpose.msra.mxu0 0
    %301 = vmatpush.bf16.xpose.msra.mxu0 0
    %302 = vmatpush.bf16.xpose.msra.mxu0 0
    %303 = vmatpush.bf16.xpose.msra.mxu0 %v294
    %304 = vmatmul.bf16.gmra.mxu0 %v291
    %v305 = vpop.f32.mrf.mxu0
    %v306 = vadd.f32 %v165, %v305
    %v307 = vpop.f32.mrf.mxu0
    %308 = vdwg.mxu0
    %309 = vrot.lane.b32.xlu0 %v196, 120
    %v310 = vpop.permute.xlu0 %309
    %311 = vrot.lane.b32.xlu0 %v196, 88
    %v312 = vpop.permute.xlu0 %311
    %v314 = vsel %vm174, %v310, 0
    %v317 = vsel %vm174, %v312, 0
    %319 = vmatpush.bf16.xpose.msra.mxu0 0
    %320 = vmatpush.bf16.xpose.msra.mxu0 0
    %321 = vmatpush.bf16.xpose.msra.mxu0 0
    %322 = vmatpush.bf16.xpose.msra.mxu0 0
    %323 = vmatpush.bf16.xpose.msra.mxu0 0
    %324 = vmatpush.bf16.xpose.msra.mxu0 0
    %325 = vmatpush.bf16.xpose.msra.mxu0 0
    %326 = vmatpush.bf16.xpose.msra.mxu0 %v317
    %327 = vmatmul.bf16.gmra.mxu0 %v314
    %v328 = vpop.f32.mrf.mxu0
    %v329 = vadd.f32 %v166, %v328
    %v330 = vpop.f32.mrf.mxu0
    %331 = vdwg.mxu0
    %v332 = vsel %vm174, %v306, -inf
    %333 = vmax.xlane.f32.xlu0 %v332
    %v334 = vpop.xlane.xlu0 %333
    %v335 = vsel %vm174, %v329, -inf
    %336 = vmax.xlane.f32.xlu0 %v335
    %v337 = vpop.xlane.xlu0 %336
    %v338 = vsub.f32 %v306, %v334
    %v339 = vsub.f32 %v329, %v337
    %v340 = vmul.f32 %v338, 1.442695
    %v341 = vpow.pop %v340
    %v342 = vmul.f32 %v339, 1.442695
    %v343 = vpow.pop %v342
    %v344 = vsel %vm174, %v341, 0.0
    %345 = vadd.xlane.f32.xlu0 %v344
    %v346 = vpop.xlane.xlu0 %345
    %v347 = vsel %vm174, %v343, 0.0
    %348 = vadd.xlane.f32.xlu0 %v347
    %v349 = vpop.xlane.xlu0 %348
    %v350 = vrcp.pop %v346
    %v351 = vrcp.pop %v349
    %v352 = vmul.f32 %v341, %v350
    %v353 = vmul.f32 %v343, %v351
    %v354 = vpack.c.bf16 %v352, %v352
    %v355 = vpack.c.bf16 %v353, %v353
    %356 = vrot.lane.b32.xlu0 %v171, 56
    %v357 = vpop.permute.xlu0 %356
    %v359 = vsel %vm174, %v354, 0
    %v362 = vsel %vm247, %v357, 0
    %364 = vmatpush.bf16.msra.mxu0 0
    %365 = vmatpush.bf16.msra.mxu0 0
    %366 = vmatpush.bf16.msra.mxu0 0
    %367 = vmatpush.bf16.msra.mxu0 0
    %368 = vmatpush.bf16.msra.mxu0 0
    %369 = vmatpush.bf16.msra.mxu0 0
    %370 = vmatpush.bf16.msra.mxu0 0
    %371 = vmatpush.bf16.msra.mxu0 %v362
    %372 = vmatmul.bf16.gmra.mxu0 %v359
    %v373 = vpop.f32.mrf.mxu0
    %v374 = vadd.f32 0.0, %v373
    %v375 = vpop.f32.mrf.mxu0
    %376 = vdwg.mxu0
    %377 = vrot.lane.b32.xlu0 %v196, 56
    %v378 = vpop.permute.xlu0 %377
    %v380 = vsel %vm174, %v355, 0
    %v383 = vsel %vm247, %v378, 0
    %385 = vmatpush.bf16.msra.mxu0 0
    %386 = vmatpush.bf16.msra.mxu0 0
    %387 = vmatpush.bf16.msra.mxu0 0
    %388 = vmatpush.bf16.msra.mxu0 0
    %389 = vmatpush.bf16.msra.mxu0 0
    %390 = vmatpush.bf16.msra.mxu0 0
    %391 = vmatpush.bf16.msra.mxu0 0
    %392 = vmatpush.bf16.msra.mxu0 %v383
    %393 = vmatmul.bf16.gmra.mxu0 %v380
    %v394 = vpop.f32.mrf.mxu0
    %v395 = vadd.f32 0.0, %v394
    %v396 = vpop.f32.mrf.mxu0
    %397 = vdwg.mxu0
    %v398 = vpack.c.bf16 %v395, %v374
    %v400 = vsel %vm174, %v398, 0
    %v403 = vsel %vm247, %v113, 0
    %405 = vmatpush.bf16.msra.mxu0 0
    %406 = vmatpush.bf16.msra.mxu0 0
    %407 = vmatpush.bf16.msra.mxu0 0
    %408 = vmatpush.bf16.msra.mxu0 0
    %409 = vmatpush.bf16.msra.mxu0 0
    %410 = vmatpush.bf16.msra.mxu0 0
    %411 = vmatpush.bf16.msra.mxu0 0
    %412 = vmatpush.bf16.msra.mxu0 %v403
    %413 = vmatmul.bf16.gmra.mxu0 %v400
    %v414 = vpop.f32.mrf.mxu0
    %v415 = vadd.f32 0.0, %v414
    %v416 = vpop.f32.mrf.mxu0
    %v417 = vadd.f32 0.0, %v416
    %418 = vdwg.mxu0
    %419 = vrot.lane.b32.xlu0 %v171, 112
    %v420 = vpop.permute.xlu0 %419
    %421 = vrot.lane.b32.xlu0 %v171, 80
    %v422 = vpop.permute.xlu0 %421
    %v424 = vsel %vm174, %v420, 0
    %v427 = vsel %vm174, %v422, 0
    %429 = vmatpush.bf16.xpose.msra.mxu0 0
    %430 = vmatpush.bf16.xpose.msra.mxu0 0
    %431 = vmatpush.bf16.xpose.msra.mxu0 0
    %432 = vmatpush.bf16.xpose.msra.mxu0 0
    %433 = vmatpush.bf16.xpose.msra.mxu0 0
    %434 = vmatpush.bf16.xpose.msra.mxu0 0
    %435 = vmatpush.bf16.xpose.msra.mxu0 0
    %436 = vmatpush.bf16.xpose.msra.mxu0 %v427
    %437 = vmatmul.bf16.gmra.mxu0 %v424
    %v438 = vpop.f32.mrf.mxu0
    %v439 = vadd.f32 %v165, %v438
    %v440 = vpop.f32.mrf.mxu0
    %441 = vdwg.mxu0
    %442 = vrot.lane.b32.xlu0 %v196, 112
    %v443 = vpop.permute.xlu0 %442
    %444 = vrot.lane.b32.xlu0 %v196, 80
    %v445 = vpop.permute.xlu0 %444
    %v447 = vsel %vm174, %v443, 0
    %v450 = vsel %vm174, %v445, 0
    %452 = vmatpush.bf16.xpose.msra.mxu0 0
    %453 = vmatpush.bf16.xpose.msra.mxu0 0
    %454 = vmatpush.bf16.xpose.msra.mxu0 0
    %455 = vmatpush.bf16.xpose.msra.mxu0 0
    %456 = vmatpush.bf16.xpose.msra.mxu0 0
    %457 = vmatpush.bf16.xpose.msra.mxu0 0
    %458 = vmatpush.bf16.xpose.msra.mxu0 0
    %459 = vmatpush.bf16.xpose.msra.mxu0 %v450
    %460 = vmatmul.bf16.gmra.mxu0 %v447
    %v461 = vpop.f32.mrf.mxu0
    %v462 = vadd.f32 %v166, %v461
    %v463 = vpop.f32.mrf.mxu0
    %464 = vdwg.mxu0
    %v465 = vsel %vm174, %v439, -inf
    %466 = vmax.xlane.f32.xlu0 %v465
    %v467 = vpop.xlane.xlu0 %466
    %v468 = vsel %vm174, %v462, -inf
    %469 = vmax.xlane.f32.xlu0 %v468
    %v470 = vpop.xlane.xlu0 %469
    %v471 = vsub.f32 %v439, %v467
    %v472 = vsub.f32 %v462, %v470
    %v473 = vmul.f32 %v471, 1.442695
    %v474 = vpow.pop %v473
    %v475 = vmul.f32 %v472, 1.442695
    %v476 = vpow.pop %v475
    %v477 = vsel %vm174, %v474, 0.0
    %478 = vadd.xlane.f32.xlu0 %v477
    %v479 = vpop.xlane.xlu0 %478
    %v480 = vsel %vm174, %v476, 0.0
    %481 = vadd.xlane.f32.xlu0 %v480
    %v482 = vpop.xlane.xlu0 %481
    %v483 = vrcp.pop %v479
    %v484 = vrcp.pop %v482
    %v485 = vmul.f32 %v474, %v483
    %v486 = vmul.f32 %v476, %v484
    %v487 = vpack.c.bf16 %v485, %v485
    %v488 = vpack.c.bf16 %v486, %v486
    %489 = vrot.lane.b32.xlu0 %v171, 48
    %v490 = vpop.permute.xlu0 %489
    %v492 = vsel %vm174, %v487, 0
    %v495 = vsel %vm247, %v490, 0
    %497 = vmatpush.bf16.msra.mxu0 0
    %498 = vmatpush.bf16.msra.mxu0 0
    %499 = vmatpush.bf16.msra.mxu0 0
    %500 = vmatpush.bf16.msra.mxu0 0
    %501 = vmatpush.bf16.msra.mxu0 0
    %502 = vmatpush.bf16.msra.mxu0 0
    %503 = vmatpush.bf16.msra.mxu0 0
    %504 = vmatpush.bf16.msra.mxu0 %v495
    %505 = vmatmul.bf16.gmra.mxu0 %v492
    %v506 = vpop.f32.mrf.mxu0
    %v507 = vadd.f32 0.0, %v506
    %v508 = vpop.f32.mrf.mxu0
    %509 = vdwg.mxu0
    %510 = vrot.lane.b32.xlu0 %v196, 48
    %v511 = vpop.permute.xlu0 %510
    %v513 = vsel %vm174, %v488, 0
    %v516 = vsel %vm247, %v511, 0
    %518 = vmatpush.bf16.msra.mxu0 0
    %519 = vmatpush.bf16.msra.mxu0 0
    %520 = vmatpush.bf16.msra.mxu0 0
    %521 = vmatpush.bf16.msra.mxu0 0
    %522 = vmatpush.bf16.msra.mxu0 0
    %523 = vmatpush.bf16.msra.mxu0 0
    %524 = vmatpush.bf16.msra.mxu0 0
    %525 = vmatpush.bf16.msra.mxu0 %v516
    %526 = vmatmul.bf16.gmra.mxu0 %v513
    %v527 = vpop.f32.mrf.mxu0
    %v528 = vadd.f32 0.0, %v527
    %v529 = vpop.f32.mrf.mxu0
    %530 = vdwg.mxu0
    %v531 = vpack.c.bf16 %v528, %v507
    %v533 = vsel %vm174, %v531, 0
    %v536 = vsel %vm247, %v114, 0
    %538 = vmatpush.bf16.msra.mxu0 0
    %539 = vmatpush.bf16.msra.mxu0 0
    %540 = vmatpush.bf16.msra.mxu0 0
    %541 = vmatpush.bf16.msra.mxu0 0
    %542 = vmatpush.bf16.msra.mxu0 0
    %543 = vmatpush.bf16.msra.mxu0 0
    %544 = vmatpush.bf16.msra.mxu0 0
    %545 = vmatpush.bf16.msra.mxu0 %v536
    %546 = vmatmul.bf16.gmra.mxu0 %v533
    %v547 = vpop.f32.mrf.mxu0
    %v548 = vadd.f32 0.0, %v547
    %v549 = vpop.f32.mrf.mxu0
    %v550 = vadd.f32 0.0, %v549
    %551 = vdwg.mxu0
    %552 = vrot.lane.b32.xlu0 %v171, 104
    %v553 = vpop.permute.xlu0 %552
    %554 = vrot.lane.b32.xlu0 %v171, 72
    %v555 = vpop.permute.xlu0 %554
    %v557 = vsel %vm174, %v553, 0
    %v560 = vsel %vm174, %v555, 0
    %562 = vmatpush.bf16.xpose.msra.mxu0 0
    %563 = vmatpush.bf16.xpose.msra.mxu0 0
    %564 = vmatpush.bf16.xpose.msra.mxu0 0
    %565 = vmatpush.bf16.xpose.msra.mxu0 0
    %566 = vmatpush.bf16.xpose.msra.mxu0 0
    %567 = vmatpush.bf16.xpose.msra.mxu0 0
    %568 = vmatpush.bf16.xpose.msra.mxu0 0
    %569 = vmatpush.bf16.xpose.msra.mxu0 %v560
    %570 = vmatmul.bf16.gmra.mxu0 %v557
    %v571 = vpop.f32.mrf.mxu0
    %v572 = vadd.f32 %v165, %v571
    %v573 = vpop.f32.mrf.mxu0
    %574 = vdwg.mxu0
    %575 = vrot.lane.b32.xlu0 %v196, 104
    %v576 = vpop.permute.xlu0 %575
    %577 = vrot.lane.b32.xlu0 %v196, 72
    %v578 = vpop.permute.xlu0 %577
    %v580 = vsel %vm174, %v576, 0
    %v583 = vsel %vm174, %v578, 0
    %585 = vmatpush.bf16.xpose.msra.mxu0 0
    %586 = vmatpush.bf16.xpose.msra.mxu0 0
    %587 = vmatpush.bf16.xpose.msra.mxu0 0
    %588 = vmatpush.bf16.xpose.msra.mxu0 0
    %589 = vmatpush.bf16.xpose.msra.mxu0 0
    %590 = vmatpush.bf16.xpose.msra.mxu0 0
    %591 = vmatpush.bf16.xpose.msra.mxu0 0
    %592 = vmatpush.bf16.xpose.msra.mxu0 %v583
    %593 = vmatmul.bf16.gmra.mxu0 %v580
    %v594 = vpop.f32.mrf.mxu0
    %v595 = vadd.f32 %v166, %v594
    %v596 = vpop.f32.mrf.mxu0
    %597 = vdwg.mxu0
    %v598 = vsel %vm174, %v572, -inf
    %599 = vmax.xlane.f32.xlu0 %v598
    %v600 = vpop.xlane.xlu0 %599
    %v601 = vsel %vm174, %v595, -inf
    %602 = vmax.xlane.f32.xlu0 %v601
    %v603 = vpop.xlane.xlu0 %602
    %v604 = vsub.f32 %v572, %v600
    %v605 = vsub.f32 %v595, %v603
    %v606 = vmul.f32 %v604, 1.442695
    %v607 = vpow.pop %v606
    %v608 = vmul.f32 %v605, 1.442695
    %v609 = vpow.pop %v608
    %v610 = vsel %vm174, %v607, 0.0
    %611 = vadd.xlane.f32.xlu0 %v610
    %v612 = vpop.xlane.xlu0 %611
    %v613 = vsel %vm174, %v609, 0.0
    %614 = vadd.xlane.f32.xlu0 %v613
    %v615 = vpop.xlane.xlu0 %614
    %v616 = vrcp.pop %v612
    %v617 = vrcp.pop %v615
    %v618 = vmul.f32 %v607, %v616
    %v619 = vmul.f32 %v609, %v617
    %v620 = vpack.c.bf16 %v618, %v618
    %v621 = vpack.c.bf16 %v619, %v619
    %622 = vrot.lane.b32.xlu0 %v171, 40
    %v623 = vpop.permute.xlu0 %622
    %v625 = vsel %vm174, %v620, 0
    %v628 = vsel %vm247, %v623, 0
    %630 = vmatpush.bf16.msra.mxu0 0
    %631 = vmatpush.bf16.msra.mxu0 0
    %632 = vmatpush.bf16.msra.mxu0 0
    %633 = vmatpush.bf16.msra.mxu0 0
    %634 = vmatpush.bf16.msra.mxu0 0
    %635 = vmatpush.bf16.msra.mxu0 0
    %636 = vmatpush.bf16.msra.mxu0 0
    %637 = vmatpush.bf16.msra.mxu0 %v628
    %638 = vmatmul.bf16.gmra.mxu0 %v625
    %v639 = vpop.f32.mrf.mxu0
    %v640 = vadd.f32 0.0, %v639
    %v641 = vpop.f32.mrf.mxu0
    %642 = vdwg.mxu0
    %643 = vrot.lane.b32.xlu0 %v196, 40
    %v644 = vpop.permute.xlu0 %643
    %v646 = vsel %vm174, %v621, 0
    %v649 = vsel %vm247, %v644, 0
    %651 = vmatpush.bf16.msra.mxu0 0
    %652 = vmatpush.bf16.msra.mxu0 0
    %653 = vmatpush.bf16.msra.mxu0 0
    %654 = vmatpush.bf16.msra.mxu0 0
    %655 = vmatpush.bf16.msra.mxu0 0
    %656 = vmatpush.bf16.msra.mxu0 0
    %657 = vmatpush.bf16.msra.mxu0 0
    %658 = vmatpush.bf16.msra.mxu0 %v649
    %659 = vmatmul.bf16.gmra.mxu0 %v646
    %v660 = vpop.f32.mrf.mxu0
    %v661 = vadd.f32 0.0, %v660
    %v662 = vpop.f32.mrf.mxu0
    %663 = vdwg.mxu0
    %v664 = vpack.c.bf16 %v661, %v640
    %v666 = vsel %vm174, %v664, 0
    %v669 = vsel %vm247, %v115, 0
    %671 = vmatpush.bf16.msra.mxu0 0
    %672 = vmatpush.bf16.msra.mxu0 0
    %673 = vmatpush.bf16.msra.mxu0 0
    %674 = vmatpush.bf16.msra.mxu0 0
    %675 = vmatpush.bf16.msra.mxu0 0
    %676 = vmatpush.bf16.msra.mxu0 0
    %677 = vmatpush.bf16.msra.mxu0 0
    %678 = vmatpush.bf16.msra.mxu0 %v669
    %679 = vmatmul.bf16.gmra.mxu0 %v666
    %v680 = vpop.f32.mrf.mxu0
    %v681 = vadd.f32 0.0, %v680
    %v682 = vpop.f32.mrf.mxu0
    %v683 = vadd.f32 0.0, %v682
    %684 = vdwg.mxu0
    %v686 = vsel %vm174, %v285, 0
    %v689 = vsel %vm247, %v112, 0
    %691 = vmatpush.bf16.msra.mxu0 0
    %692 = vmatpush.bf16.msra.mxu0 0
    %693 = vmatpush.bf16.msra.mxu0 0
    %694 = vmatpush.bf16.msra.mxu0 0
    %695 = vmatpush.bf16.msra.mxu0 0
    %696 = vmatpush.bf16.msra.mxu0 0
    %697 = vmatpush.bf16.msra.mxu0 0
    %698 = vmatpush.bf16.msra.mxu0 %v689
    %699 = vmatmul.bf16.gmra.mxu0 %v686
    %v700 = vpop.f32.mrf.mxu0
    %v701 = vadd.f32 %v415, %v700
    %v702 = vpop.f32.mrf.mxu0
    %v703 = vadd.f32 %v417, %v702
    %704 = vdwg.mxu0
    %v705 = vadd.f32 %v701, %v548
    %v706 = vadd.f32 %v703, %v550
    %v707 = vadd.f32 %v705, %v681
    %v708 = vadd.f32 %v706, %v683
    %v709 = vperm.slane %v116, 0
    %v710 = vadd.f32 %v707, %v709
    %v711 = vadd.f32 %v708, %v709
    %v712 = vadd.f32 %v100, %v710
    %v713 = vadd.f32 %v101, %v711
    %v714 = vsel %vm44, %v712, 0.0
    %715 = vadd.xlane.f32.xlu0 %v714
    %v716 = vpop.xlane.xlu0 %715
    %v717 = vsel %vm44, %v713, 0.0
    %718 = vadd.xlane.f32.xlu0 %v717
    %v719 = vpop.xlane.xlu0 %718
    %v720 = vmul.f32 %v716, %v57
    %v721 = vmul.f32 %v719, %v57
    %v722 = vsub.f32 %v712, %v720
    %v723 = vsub.f32 %v713, %v721
    %v724 = vmul.f32 %v722, %v722
    %v725 = vmul.f32 %v723, %v723
    %v726 = vsel %vm44, %v724, 0.0
    %727 = vadd.xlane.f32.xlu0 %v726
    %v728 = vpop.xlane.xlu0 %727
    %v729 = vsel %vm44, %v725, 0.0
    %730 = vadd.xlane.f32.xlu0 %v729
    %v731 = vpop.xlane.xlu0 %730
    %v732 = vmul.f32 %v728, %v57
    %v733 = vmul.f32 %v731, %v57
    %v734 = vadd.f32 %v732, 1e-12
    %v735 = vadd.f32 %v733, 1e-12
    %v736 = vrsqrt.pop %v734
    %v737 = vmul.f32 %v736, %v734
    %v738 = vmul.f32 %v737, %v736
    %v739 = vmul.f32 0.5, %v738
    %v740 = vsub.f32 1.5, %v739
    %v741 = vmul.f32 %v736, %v740
    %vm742 = vweird.f32 %v734
    %vm743 = vweird.f32 %v736
    %vm744 = vmor %vm742, %vm743
    %v745 = vsel %vm744, %v736, %v741
    %v746 = vrsqrt.pop %v735
    %v747 = vmul.f32 %v746, %v735
    %v748 = vmul.f32 %v747, %v746
    %v749 = vmul.f32 0.5, %v748
    %v750 = vsub.f32 1.5, %v749
    %v751 = vmul.f32 %v746, %v750
    %vm752 = vweird.f32 %v735
    %vm753 = vweird.f32 %v746
    %vm754 = vmor %vm752, %vm753
    %v755 = vsel %vm754, %v746, %v751
    %v756 = vmul.f32 %v722, %v745
    %v757 = vmul.f32 %v723, %v755
    %v758 = vperm.slane %v116, 1
    %v759 = vmul.f32 %v756, %v758
    %v760 = vmul.f32 %v757, %v758
    %v761 = vperm.slane %v116, 2
    %v762 = vadd.f32 %v759, %v761
    %v763 = vadd.f32 %v760, %v761
    %v764 = vpack.c.bf16 %v763, %v762
    %v766 = vperm.slane %v121, 0
    %v772 = vunpack.c.l.b16 %v117
    %v773 = vunpack.c.l.b16 %v118
    %v774 = vunpack.c.l.b16 %v119
    %v775 = vunpack.c.l.b16 %v120
    %v776 = vpack.c.b16 %v773, %v772
    %v777 = vpack.c.b16 %v775, %v774
    %v781 = vsel %vm44, %v764, 0
    %783 = vmatpush.bf16.msra.mxu0 0
    %784 = vmatpush.bf16.msra.mxu0 0
    %785 = vmatpush.bf16.msra.mxu0 0
    %786 = vmatpush.bf16.msra.mxu0 0
    %787 = vmatpush.bf16.msra.mxu0 0
    %788 = vmatpush.bf16.msra.mxu0 0
    %789 = vmatpush.bf16.msra.mxu0 %v777
    %790 = vmatpush.bf16.msra.mxu0 %v776
    %791 = vmatmul.bf16.gmra.mxu0 %v781
    %v792 = vpop.f32.mrf.mxu0
    %v793 = vadd.f32 %v766, %v792
    %v794 = vpop.f32.mrf.mxu0
    %v795 = vadd.f32 %v766, %v794
    %796 = vdwg.mxu0
    %v797 = vmul.f32 %v793, %v793
    %v798 = vmul.f32 %v795, %v795
    %v799 = vmul.f32 %v793, %v797
    %v800 = vmul.f32 %v795, %v798
    %v801 = vmul.f32 %v799, 0.044715
    %v802 = vmul.f32 %v800, 0.044715
    %v803 = vadd.f32 %v793, %v801
    %v804 = vadd.f32 %v795, %v802
    %v805 = vmul.f32 %v803, 0.7978846
    %v806 = vmul.f32 %v804, 0.7978846
    %v807 = vtanh.pop %v805
    %v808 = vtanh.pop %v806
    %v809 = vadd.f32 %v807, 1.0
    %v810 = vadd.f32 %v808, 1.0
    %v811 = vmul.f32 %v809, 0.5
    %v812 = vmul.f32 %v810, 0.5
    %v813 = vmul.f32 %v793, %v811
    %v814 = vmul.f32 %v795, %v812
    %v815 = vpack.c.bf16 %v814, %v813
    %v816 = vperm.slane %v116, 5
    %v825 = vunpack.c.l.b16 %v122
    %v826 = vunpack.c.l.b16 %v123
    %v827 = vunpack.c.l.b16 %v124
    %v828 = vunpack.c.l.b16 %v125
    %v829 = vunpack.c.l.b16 %v126
    %v830 = vunpack.c.l.b16 %v127
    %v831 = vunpack.c.l.b16 %v128
    %v832 = vunpack.c.l.b16 %v129
    %v833 = vpack.c.b16 %v826, %v825
    %v834 = vpack.c.b16 %v828, %v827
    %v835 = vpack.c.b16 %v830, %v829
    %v836 = vpack.c.b16 %v832, %v831
    %vm841 = vcmask 523264
    %v843 = vsel %vm841, %v815, 0
    %845 = vmatpush.bf16.msra.mxu0 0
    %846 = vmatpush.bf16.msra.mxu0 0
    %847 = vmatpush.bf16.msra.mxu0 0
    %848 = vmatpush.bf16.msra.mxu0 0
    %849 = vmatpush.bf16.msra.mxu0 %v836
    %850 = vmatpush.bf16.msra.mxu0 %v835
    %851 = vmatpush.bf16.msra.mxu0 %v834
    %852 = vmatpush.bf16.msra.mxu0 %v833
    %853 = vmatmul.bf16.gmra.mxu0 %v843
    %v854 = vpop.f32.mrf.mxu0
    %v855 = vadd.f32 %v816, %v854
    %v856 = vpop.f32.mrf.mxu0
    %v857 = vadd.f32 %v816, %v856
    %858 = vdwg.mxu0
    %v859 = vadd.f32 %v762, %v855
    %v860 = vadd.f32 %v763, %v857
    %v861 = vsel %vm44, %v859, 0.0
    %862 = vadd.xlane.f32.xlu0 %v861
    %v863 = vpop.xlane.xlu0 %862
    %v864 = vsel %vm44, %v860, 0.0
    %865 = vadd.xlane.f32.xlu0 %v864
    %v866 = vpop.xlane.xlu0 %865
    %v867 = vmul.f32 %v863, %v57
    %v868 = vmul.f32 %v866, %v57
    %v869 = vsub.f32 %v859, %v867
    %v870 = vsub.f32 %v860, %v868
    %v871 = vmul.f32 %v869, %v869
    %v872 = vmul.f32 %v870, %v870
    %v873 = vsel %vm44, %v871, 0.0
    %874 = vadd.xlane.f32.xlu0 %v873
    %v875 = vpop.xlane.xlu0 %874
    %v876 = vsel %vm44, %v872, 0.0
    %877 = vadd.xlane.f32.xlu0 %v876
    %v878 = vpop.xlane.xlu0 %877
    %v879 = vmul.f32 %v875, %v57
    %v880 = vmul.f32 %v878, %v57
    %v881 = vadd.f32 %v879, 1e-12
    %v882 = vadd.f32 %v880, 1e-12
    %v883 = vrsqrt.pop %v881
    %v884 = vmul.f32 %v883, %v881
    %v885 = vmul.f32 %v884, %v883
    %v886 = vmul.f32 0.5, %v885
    %v887 = vsub.f32 1.5, %v886
    %v888 = vmul.f32 %v883, %v887
    %vm889 = vweird.f32 %v881
    %vm890 = vweird.f32 %v883
    %vm891 = vmor %vm889, %vm890
    %v892 = vsel %vm891, %v883, %v888
    %v893 = vrsqrt.pop %v882
    %v894 = vmul.f32 %v893, %v882
    %v895 = vmul.f32 %v894, %v893
    %v896 = vmul.f32 0.5, %v895
    %v897 = vsub.f32 1.5, %v896
    %v898 = vmul.f32 %v893, %v897
    %vm899 = vweird.f32 %v882
    %vm900 = vweird.f32 %v893
    %vm901 = vmor %vm899, %vm900
    %v902 = vsel %vm901, %v893, %v898
    %v903 = vmul.f32 %v869, %v892
    %v904 = vmul.f32 %v870, %v902
    %v905 = vperm.slane %v116, 3
    %v906 = vmul.f32 %v903, %v905
    %v907 = vmul.f32 %v904, %v905
    %v908 = vperm.slane %v116, 4
    %v909 = vadd.f32 %v906, %v908
    %v910 = vadd.f32 %v907, %v908
    %s911 = scalar_lea.vmem %s4, 16
    %v912 = vld [vmem:[%s911] sm:$0xf]
    %v913 = vld [vmem:[%s911 + $0x4] sm:$0xf]
    %v914 = vld [vmem:[%s911 + $0x8] sm:$0xf]
    %v915 = vld [vmem:[%s911 + $0xc] sm:$0xf]
    %s916 = scalar_lea.vmem %s5, 1
    %v917 = vld [vmem:[%s916] sm:$0x1]
    %s918 = scalar_lea.vmem %s6, 16
    %v919 = vld [vmem:[%s918] sm:$0xf]
    %v920 = vld [vmem:[%s918 + $0x4] sm:$0xf]
    %v921 = vld [vmem:[%s918 + $0x8] sm:$0xf]
    %v922 = vld [vmem:[%s918 + $0xc] sm:$0xf]
    %s923 = scalar_lea.vmem %s7, 8
    %v924 = vld [vmem:[%s923] sm:$0x3f]
    %s925 = scalar_lea.vmem %s8, 16
    %v926 = vld [vmem:[%s925] sm:$0xf]
    %v927 = vld [vmem:[%s925 + $0x4] sm:$0xf]
    %v928 = vld [vmem:[%s925 + $0x8] sm:$0xf]
    %v929 = vld [vmem:[%s925 + $0xc] sm:$0xf]
    %s930 = scalar_lea.vmem %s9, 1
    %v931 = vld [vmem:[%s930] sm:$0x1]
    %s932 = scalar_lea.vmem %s10, 32
    %v933 = vld [vmem:[%s932] sm:$0xf]
    %v934 = vld [vmem:[%s932 + $0x4] sm:$0xf]
    %v935 = vld [vmem:[%s932 + $0x8] sm:$0xf]
    %v936 = vld [vmem:[%s932 + $0xc] sm:$0xf]
    %v937 = vld [vmem:[%s932 + $0x10] sm:$0xf]
    %v938 = vld [vmem:[%s932 + $0x14] sm:$0xf]
    %v939 = vld [vmem:[%s932 + $0x18] sm:$0xf]
    %v940 = vld [vmem:[%s932 + $0x1c] sm:$0xf]
    %v941 = vpack.c.bf16 %v910, %v909
    %v943 = vperm.slane %v917, 0
    %v949 = vunpack.c.l.b16 %v912
    %v950 = vunpack.c.l.b16 %v913
    %v951 = vunpack.c.l.b16 %v914
    %v952 = vunpack.c.l.b16 %v915
    %v953 = vpack.c.b16 %v950, %v949
    %v954 = vpack.c.b16 %v952, %v951
    %v958 = vsel %vm44, %v941, 0
    %960 = vmatpush.bf16.msra.mxu0 0
    %961 = vmatpush.bf16.msra.mxu0 0
    %962 = vmatpush.bf16.msra.mxu0 0
    %963 = vmatpush.bf16.msra.mxu0 0
    %964 = vmatpush.bf16.msra.mxu0 0
    %965 = vmatpush.bf16.msra.mxu0 0
    %966 = vmatpush.bf16.msra.mxu0 %v954
    %967 = vmatpush.bf16.msra.mxu0 %v953
    %968 = vmatmul.bf16.gmra.mxu0 %v958
    %v969 = vpop.f32.mrf.mxu0
    %v970 = vadd.f32 %v943, %v969
    %v971 = vpop.f32.mrf.mxu0
    %v972 = vadd.f32 %v943, %v971
    %973 = vdwg.mxu0
    %v974 = vpack.c.bf16 %v970, %v970
    %v975 = vpack.c.bf16 %v972, %v972
    %v977 = vunpack.c.l.b16 %v974
    %v978 = vpack.c.b16 %v977, %v977
    %979 = vrot.lane.b32.xlu0 %v978, 96
    %v980 = vpop.permute.xlu0 %979
    %v982 = vsel %vm174, %v974, 0
    %v985 = vsel %vm174, %v980, 0
    %987 = vmatpush.bf16.xpose.msra.mxu0 0
    %988 = vmatpush.bf16.xpose.msra.mxu0 0
    %989 = vmatpush.bf16.xpose.msra.mxu0 0
    %990 = vmatpush.bf16.xpose.msra.mxu0 0
    %991 = vmatpush.bf16.xpose.msra.mxu0 0
    %992 = vmatpush.bf16.xpose.msra.mxu0 0
    %993 = vmatpush.bf16.xpose.msra.mxu0 0
    %994 = vmatpush.bf16.xpose.msra.mxu0 %v985
    %995 = vmatmul.bf16.gmra.mxu0 %v982
    %v996 = vpop.f32.mrf.mxu0
    %v997 = vadd.f32 %v165, %v996
    %v998 = vpop.f32.mrf.mxu0
    %999 = vdwg.mxu0
    %v1001 = vunpack.c.l.b16 %v975
    %v1002 = vpack.c.b16 %v1001, %v1001
    %1003 = vrot.lane.b32.xlu0 %v1002, 96
    %v1004 = vpop.permute.xlu0 %1003
    %v1006 = vsel %vm174, %v975, 0
    %v1009 = vsel %vm174, %v1004, 0
    %1011 = vmatpush.bf16.xpose.msra.mxu0 0
    %1012 = vmatpush.bf16.xpose.msra.mxu0 0
    %1013 = vmatpush.bf16.xpose.msra.mxu0 0
    %1014 = vmatpush.bf16.xpose.msra.mxu0 0
    %1015 = vmatpush.bf16.xpose.msra.mxu0 0
    %1016 = vmatpush.bf16.xpose.msra.mxu0 0
    %1017 = vmatpush.bf16.xpose.msra.mxu0 0
    %1018 = vmatpush.bf16.xpose.msra.mxu0 %v1009
    %1019 = vmatmul.bf16.gmra.mxu0 %v1006
    %v1020 = vpop.f32.mrf.mxu0
    %v1021 = vadd.f32 %v166, %v1020
    %v1022 = vpop.f32.mrf.mxu0
    %1023 = vdwg.mxu0
    %v1024 = vsel %vm174, %v997, -inf
    %1025 = vmax.xlane.f32.xlu0 %v1024
    %v1026 = vpop.xlane.xlu0 %1025
    %v1027 = vsel %vm174, %v1021, -inf
    %1028 = vmax.xlane.f32.xlu0 %v1027
    %v1029 = vpop.xlane.xlu0 %1028
    %v1030 = vsub.f32 %v997, %v1026
    %v1031 = vsub.f32 %v1021, %v1029
    %v1032 = vmul.f32 %v1030, 1.442695
    %v1033 = vpow.pop %v1032
    %v1034 = vmul.f32 %v1031, 1.442695
    %v1035 = vpow.pop %v1034
    %v1036 = vsel %vm174, %v1033, 0.0
    %1037 = vadd.xlane.f32.xlu0 %v1036
    %v1038 = vpop.xlane.xlu0 %1037
    %v1039 = vsel %vm174, %v1035, 0.0
    %1040 = vadd.xlane.f32.xlu0 %v1039
    %v1041 = vpop.xlane.xlu0 %1040
    %v1042 = vrcp.pop %v1038
    %v1043 = vrcp.pop %v1041
    %v1044 = vmul.f32 %v1033, %v1042
    %v1045 = vmul.f32 %v1035, %v1043
    %v1046 = vpack.c.bf16 %v1044, %v1044
    %v1047 = vpack.c.bf16 %v1045, %v1045
    %1048 = vrot.lane.b32.xlu0 %v978, 64
    %v1049 = vpop.permute.xlu0 %1048
    %v1051 = vsel %vm174, %v1046, 0
    %v1054 = vsel %vm247, %v1049, 0
    %1056 = vmatpush.bf16.msra.mxu0 0
    %1057 = vmatpush.bf16.msra.mxu0 0
    %1058 = vmatpush.bf16.msra.mxu0 0
    %1059 = vmatpush.bf16.msra.mxu0 0
    %1060 = vmatpush.bf16.msra.mxu0 0
    %1061 = vmatpush.bf16.msra.mxu0 0
    %1062 = vmatpush.bf16.msra.mxu0 0
    %1063 = vmatpush.bf16.msra.mxu0 %v1054
    %1064 = vmatmul.bf16.gmra.mxu0 %v1051
    %v1065 = vpop.f32.mrf.mxu0
    %v1066 = vadd.f32 0.0, %v1065
    %v1067 = vpop.f32.mrf.mxu0
    %1068 = vdwg.mxu0
    %1069 = vrot.lane.b32.xlu0 %v1002, 64
    %v1070 = vpop.permute.xlu0 %1069
    %v1072 = vsel %vm174, %v1047, 0
    %v1075 = vsel %vm247, %v1070, 0
    %1077 = vmatpush.bf16.msra.mxu0 0
    %1078 = vmatpush.bf16.msra.mxu0 0
    %1079 = vmatpush.bf16.msra.mxu0 0
    %1080 = vmatpush.bf16.msra.mxu0 0
    %1081 = vmatpush.bf16.msra.mxu0 0
    %1082 = vmatpush.bf16.msra.mxu0 0
    %1083 = vmatpush.bf16.msra.mxu0 0
    %1084 = vmatpush.bf16.msra.mxu0 %v1075
    %1085 = vmatmul.bf16.gmra.mxu0 %v1072
    %v1086 = vpop.f32.mrf.mxu0
    %v1087 = vadd.f32 0.0, %v1086
    %v1088 = vpop.f32.mrf.mxu0
    %1089 = vdwg.mxu0
    %v1090 = vpack.c.bf16 %v1087, %v1066
    %1091 = vrot.lane.b32.xlu0 %v978, 120
    %v1092 = vpop.permute.xlu0 %1091
    %1093 = vrot.lane.b32.xlu0 %v978, 88
    %v1094 = vpop.permute.xlu0 %1093
    %v1096 = vsel %vm174, %v1092, 0
    %v1099 = vsel %vm174, %v1094, 0
    %1101 = vmatpush.bf16.xpose.msra.mxu0 0
    %1102 = vmatpush.bf16.xpose.msra.mxu0 0
    %1103 = vmatpush.bf16.xpose.msra.mxu0 0
    %1104 = vmatpush.bf16.xpose.msra.mxu0 0
    %1105 = vmatpush.bf16.xpose.msra.mxu0 0
    %1106 = vmatpush.bf16.xpose.msra.mxu0 0
    %1107 = vmatpush.bf16.xpose.msra.mxu0 0
    %1108 = vmatpush.bf16.xpose.msra.mxu0 %v1099
    %1109 = vmatmul.bf16.gmra.mxu0 %v1096
    %v1110 = vpop.f32.mrf.mxu0
    %v1111 = vadd.f32 %v165, %v1110
    %v1112 = vpop.f32.mrf.mxu0
    %1113 = vdwg.mxu0
    %1114 = vrot.lane.b32.xlu0 %v1002, 120
    %v1115 = vpop.permute.xlu0 %1114
    %1116 = vrot.lane.b32.xlu0 %v1002, 88
    %v1117 = vpop.permute.xlu0 %1116
    %v1119 = vsel %vm174, %v1115, 0
    %v1122 = vsel %vm174, %v1117, 0
    %1124 = vmatpush.bf16.xpose.msra.mxu0 0
    %1125 = vmatpush.bf16.xpose.msra.mxu0 0
    %1126 = vmatpush.bf16.xpose.msra.mxu0 0
    %1127 = vmatpush.bf16.xpose.msra.mxu0 0
    %1128 = vmatpush.bf16.xpose.msra.mxu0 0
    %1129 = vmatpush.bf16.xpose.msra.mxu0 0
    %1130 = vmatpush.bf16.xpose.msra.mxu0 0
    %1131 = vmatpush.bf16.xpose.msra.mxu0 %v1122
    %1132 = vmatmul.bf16.gmra.mxu0 %v1119
    %v1133 = vpop.f32.mrf.mxu0
    %v1134 = vadd.f32 %v166, %v1133
    %v1135 = vpop.f32.mrf.mxu0
    %1136 = vdwg.mxu0
    %v1137 = vsel %vm174, %v1111, -inf
    %1138 = vmax.xlane.f32.xlu0 %v1137
    %v1139 = vpop.xlane.xlu0 %1138
    %v1140 = vsel %vm174, %v1134, -inf
    %1141 = vmax.xlane.f32.xlu0 %v1140
    %v1142 = vpop.xlane.xlu0 %1141
    %v1143 = vsub.f32 %v1111, %v1139
    %v1144 = vsub.f32 %v1134, %v1142
    %v1145 = vmul.f32 %v1143, 1.442695
    %v1146 = vpow.pop %v1145
    %v1147 = vmul.f32 %v1144, 1.442695
    %v1148 = vpow.pop %v1147
    %v1149 = vsel %vm174, %v1146, 0.0
    %1150 = vadd.xlane.f32.xlu0 %v1149
    %v1151 = vpop.xlane.xlu0 %1150
    %v1152 = vsel %vm174, %v1148, 0.0
    %1153 = vadd.xlane.f32.xlu0 %v1152
    %v1154 = vpop.xlane.xlu0 %1153
    %v1155 = vrcp.pop %v1151
    %v1156 = vrcp.pop %v1154
    %v1157 = vmul.f32 %v1146, %v1155
    %v1158 = vmul.f32 %v1148, %v1156
    %v1159 = vpack.c.bf16 %v1157, %v1157
    %v1160 = vpack.c.bf16 %v1158, %v1158
    %1161 = vrot.lane.b32.xlu0 %v978, 56
    %v1162 = vpop.permute.xlu0 %1161
    %v1164 = vsel %vm174, %v1159, 0
    %v1167 = vsel %vm247, %v1162, 0
    %1169 = vmatpush.bf16.msra.mxu0 0
    %1170 = vmatpush.bf16.msra.mxu0 0
    %1171 = vmatpush.bf16.msra.mxu0 0
    %1172 = vmatpush.bf16.msra.mxu0 0
    %1173 = vmatpush.bf16.msra.mxu0 0
    %1174 = vmatpush.bf16.msra.mxu0 0
    %1175 = vmatpush.bf16.msra.mxu0 0
    %1176 = vmatpush.bf16.msra.mxu0 %v1167
    %1177 = vmatmul.bf16.gmra.mxu0 %v1164
    %v1178 = vpop.f32.mrf.mxu0
    %v1179 = vadd.f32 0.0, %v1178
    %v1180 = vpop.f32.mrf.mxu0
    %1181 = vdwg.mxu0
    %1182 = vrot.lane.b32.xlu0 %v1002, 56
    %v1183 = vpop.permute.xlu0 %1182
    %v1185 = vsel %vm174, %v1160, 0
    %v1188 = vsel %vm247, %v1183, 0
    %1190 = vmatpush.bf16.msra.mxu0 0
    %1191 = vmatpush.bf16.msra.mxu0 0
    %1192 = vmatpush.bf16.msra.mxu0 0
    %1193 = vmatpush.bf16.msra.mxu0 0
    %1194 = vmatpush.bf16.msra.mxu0 0
    %1195 = vmatpush.bf16.msra.mxu0 0
    %1196 = vmatpush.bf16.msra.mxu0 0
    %1197 = vmatpush.bf16.msra.mxu0 %v1188
    %1198 = vmatmul.bf16.gmra.mxu0 %v1185
    %v1199 = vpop.f32.mrf.mxu0
    %v1200 = vadd.f32 0.0, %v1199
    %v1201 = vpop.f32.mrf.mxu0
    %1202 = vdwg.mxu0
    %v1203 = vpack.c.bf16 %v1200, %v1179
    %v1205 = vsel %vm174, %v1203, 0
    %v1208 = vsel %vm247, %v920, 0
    %1210 = vmatpush.bf16.msra.mxu0 0
    %1211 = vmatpush.bf16.msra.mxu0 0
    %1212 = vmatpush.bf16.msra.mxu0 0
    %1213 = vmatpush.bf16.msra.mxu0 0
    %1214 = vmatpush.bf16.msra.mxu0 0
    %1215 = vmatpush.bf16.msra.mxu0 0
    %1216 = vmatpush.bf16.msra.mxu0 0
    %1217 = vmatpush.bf16.msra.mxu0 %v1208
    %1218 = vmatmul.bf16.gmra.mxu0 %v1205
    %v1219 = vpop.f32.mrf.mxu0
    %v1220 = vadd.f32 0.0, %v1219
    %v1221 = vpop.f32.mrf.mxu0
    %v1222 = vadd.f32 0.0, %v1221
    %1223 = vdwg.mxu0
    %1224 = vrot.lane.b32.xlu0 %v978, 112
    %v1225 = vpop.permute.xlu0 %1224
    %1226 = vrot.lane.b32.xlu0 %v978, 80
    %v1227 = vpop.permute.xlu0 %1226
    %v1229 = vsel %vm174, %v1225, 0
    %v1232 = vsel %vm174, %v1227, 0
    %1234 = vmatpush.bf16.xpose.msra.mxu0 0
    %1235 = vmatpush.bf16.xpose.msra.mxu0 0
    %1236 = vmatpush.bf16.xpose.msra.mxu0 0
    %1237 = vmatpush.bf16.xpose.msra.mxu0 0
    %1238 = vmatpush.bf16.xpose.msra.mxu0 0
    %1239 = vmatpush.bf16.xpose.msra.mxu0 0
    %1240 = vmatpush.bf16.xpose.msra.mxu0 0
    %1241 = vmatpush.bf16.xpose.msra.mxu0 %v1232
    %1242 = vmatmul.bf16.gmra.mxu0 %v1229
    %v1243 = vpop.f32.mrf.mxu0
    %v1244 = vadd.f32 %v165, %v1243
    %v1245 = vpop.f32.mrf.mxu0
    %1246 = vdwg.mxu0
    %1247 = vrot.lane.b32.xlu0 %v1002, 112
    %v1248 = vpop.permute.xlu0 %1247
    %1249 = vrot.lane.b32.xlu0 %v1002, 80
    %v1250 = vpop.permute.xlu0 %1249
    %v1252 = vsel %vm174, %v1248, 0
    %v1255 = vsel %vm174, %v1250, 0
    %1257 = vmatpush.bf16.xpose.msra.mxu0 0
    %1258 = vmatpush.bf16.xpose.msra.mxu0 0
    %1259 = vmatpush.bf16.xpose.msra.mxu0 0
    %1260 = vmatpush.bf16.xpose.msra.mxu0 0
    %1261 = vmatpush.bf16.xpose.msra.mxu0 0
    %1262 = vmatpush.bf16.xpose.msra.mxu0 0
    %1263 = vmatpush.bf16.xpose.msra.mxu0 0
    %1264 = vmatpush.bf16.xpose.msra.mxu0 %v1255
    %1265 = vmatmul.bf16.gmra.mxu0 %v1252
    %v1266 = vpop.f32.mrf.mxu0
    %v1267 = vadd.f32 %v166, %v1266
    %v1268 = vpop.f32.mrf.mxu0
    %1269 = vdwg.mxu0
    %v1270 = vsel %vm174, %v1244, -inf
    %1271 = vmax.xlane.f32.xlu0 %v1270
    %v1272 = vpop.xlane.xlu0 %1271
    %v1273 = vsel %vm174, %v1267, -inf
    %1274 = vmax.xlane.f32.xlu0 %v1273
    %v1275 = vpop.xlane.xlu0 %1274
    %v1276 = vsub.f32 %v1244, %v1272
    %v1277 = vsub.f32 %v1267, %v1275
    %v1278 = vmul.f32 %v1276, 1.442695
    %v1279 = vpow.pop %v1278
    %v1280 = vmul.f32 %v1277, 1.442695
    %v1281 = vpow.pop %v1280
    %v1282 = vsel %vm174, %v1279, 0.0
    %1283 = vadd.xlane.f32.xlu0 %v1282
    %v1284 = vpop.xlane.xlu0 %1283
    %v1285 = vsel %vm174, %v1281, 0.0
    %1286 = vadd.xlane.f32.xlu0 %v1285
    %v1287 = vpop.xlane.xlu0 %1286
    %v1288 = vrcp.pop %v1284
    %v1289 = vrcp.pop %v1287
    %v1290 = vmul.f32 %v1279, %v1288
    %v1291 = vmul.f32 %v1281, %v1289
    %v1292 = vpack.c.bf16 %v1290, %v1290
    %v1293 = vpack.c.bf16 %v1291, %v1291
    %1294 = vrot.lane.b32.xlu0 %v978, 48
    %v1295 = vpop.permute.xlu0 %1294
    %v1297 = vsel %vm174, %v1292, 0
    %v1300 = vsel %vm247, %v1295, 0
    %1302 = vmatpush.bf16.msra.mxu0 0
    %1303 = vmatpush.bf16.msra.mxu0 0
    %1304 = vmatpush.bf16.msra.mxu0 0
    %1305 = vmatpush.bf16.msra.mxu0 0
    %1306 = vmatpush.bf16.msra.mxu0 0
    %1307 = vmatpush.bf16.msra.mxu0 0
    %1308 = vmatpush.bf16.msra.mxu0 0
    %1309 = vmatpush.bf16.msra.mxu0 %v1300
    %1310 = vmatmul.bf16.gmra.mxu0 %v1297
    %v1311 = vpop.f32.mrf.mxu0
    %v1312 = vadd.f32 0.0, %v1311
    %v1313 = vpop.f32.mrf.mxu0
    %1314 = vdwg.mxu0
    %1315 = vrot.lane.b32.xlu0 %v1002, 48
    %v1316 = vpop.permute.xlu0 %1315
    %v1318 = vsel %vm174, %v1293, 0
    %v1321 = vsel %vm247, %v1316, 0
    %1323 = vmatpush.bf16.msra.mxu0 0
    %1324 = vmatpush.bf16.msra.mxu0 0
    %1325 = vmatpush.bf16.msra.mxu0 0
    %1326 = vmatpush.bf16.msra.mxu0 0
    %1327 = vmatpush.bf16.msra.mxu0 0
    %1328 = vmatpush.bf16.msra.mxu0 0
    %1329 = vmatpush.bf16.msra.mxu0 0
    %1330 = vmatpush.bf16.msra.mxu0 %v1321
    %1331 = vmatmul.bf16.gmra.mxu0 %v1318
    %v1332 = vpop.f32.mrf.mxu0
    %v1333 = vadd.f32 0.0, %v1332
    %v1334 = vpop.f32.mrf.mxu0
    %1335 = vdwg.mxu0
    %v1336 = vpack.c.bf16 %v1333, %v1312
    %v1338 = vsel %vm174, %v1336, 0
    %v1341 = vsel %vm247, %v921, 0
    %1343 = vmatpush.bf16.msra.mxu0 0
    %1344 = vmatpush.bf16.msra.mxu0 0
    %1345 = vmatpush.bf16.msra.mxu0 0
    %1346 = vmatpush.bf16.msra.mxu0 0
    %1347 = vmatpush.bf16.msra.mxu0 0
    %1348 = vmatpush.bf16.msra.mxu0 0
    %1349 = vmatpush.bf16.msra.mxu0 0
    %1350 = vmatpush.bf16.msra.mxu0 %v1341
    %1351 = vmatmul.bf16.gmra.mxu0 %v1338
    %v1352 = vpop.f32.mrf.mxu0
    %v1353 = vadd.f32 0.0, %v1352
    %v1354 = vpop.f32.mrf.mxu0
    %v1355 = vadd.f32 0.0, %v1354
    %1356 = vdwg.mxu0
    %1357 = vrot.lane.b32.xlu0 %v978, 104
    %v1358 = vpop.permute.xlu0 %1357
    %1359 = vrot.lane.b32.xlu0 %v978, 72
    %v1360 = vpop.permute.xlu0 %1359
    %v1362 = vsel %vm174, %v1358, 0
    %v1365 = vsel %vm174, %v1360, 0
    %1367 = vmatpush.bf16.xpose.msra.mxu0 0
    %1368 = vmatpush.bf16.xpose.msra.mxu0 0
    %1369 = vmatpush.bf16.xpose.msra.mxu0 0
    %1370 = vmatpush.bf16.xpose.msra.mxu0 0
    %1371 = vmatpush.bf16.xpose.msra.mxu0 0
    %1372 = vmatpush.bf16.xpose.msra.mxu0 0
    %1373 = vmatpush.bf16.xpose.msra.mxu0 0
    %1374 = vmatpush.bf16.xpose.msra.mxu0 %v1365
    %1375 = vmatmul.bf16.gmra.mxu0 %v1362
    %v1376 = vpop.f32.mrf.mxu0
    %v1377 = vadd.f32 %v165, %v1376
    %v1378 = vpop.f32.mrf.mxu0
    %1379 = vdwg.mxu0
    %1380 = vrot.lane.b32.xlu0 %v1002, 104
    %v1381 = vpop.permute.xlu0 %1380
    %1382 = vrot.lane.b32.xlu0 %v1002, 72
    %v1383 = vpop.permute.xlu0 %1382
    %v1385 = vsel %vm174, %v1381, 0
    %v1388 = vsel %vm174, %v1383, 0
    %1390 = vmatpush.bf16.xpose.msra.mxu0 0
    %1391 = vmatpush.bf16.xpose.msra.mxu0 0
    %1392 = vmatpush.bf16.xpose.msra.mxu0 0
    %1393 = vmatpush.bf16.xpose.msra.mxu0 0
    %1394 = vmatpush.bf16.xpose.msra.mxu0 0
    %1395 = vmatpush.bf16.xpose.msra.mxu0 0
    %1396 = vmatpush.bf16.xpose.msra.mxu0 0
    %1397 = vmatpush.bf16.xpose.msra.mxu0 %v1388
    %1398 = vmatmul.bf16.gmra.mxu0 %v1385
    %v1399 = vpop.f32.mrf.mxu0
    %v1400 = vadd.f32 %v166, %v1399
    %v1401 = vpop.f32.mrf.mxu0
    %1402 = vdwg.mxu0
    %v1403 = vsel %vm174, %v1377, -inf
    %1404 = vmax.xlane.f32.xlu0 %v1403
    %v1405 = vpop.xlane.xlu0 %1404
    %v1406 = vsel %vm174, %v1400, -inf
    %1407 = vmax.xlane.f32.xlu0 %v1406
    %v1408 = vpop.xlane.xlu0 %1407
    %v1409 = vsub.f32 %v1377, %v1405
    %v1410 = vsub.f32 %v1400, %v1408
    %v1411 = vmul.f32 %v1409, 1.442695
    %v1412 = vpow.pop %v1411
    %v1413 = vmul.f32 %v1410, 1.442695
    %v1414 = vpow.pop %v1413
    %v1415 = vsel %vm174, %v1412, 0.0
    %1416 = vadd.xlane.f32.xlu0 %v1415
    %v1417 = vpop.xlane.xlu0 %1416
    %v1418 = vsel %vm174, %v1414, 0.0
    %1419 = vadd.xlane.f32.xlu0 %v1418
    %v1420 = vpop.xlane.xlu0 %1419
    %v1421 = vrcp.pop %v1417
    %v1422 = vrcp.pop %v1420
    %v1423 = vmul.f32 %v1412, %v1421
    %v1424 = vmul.f32 %v1414, %v1422
    %v1425 = vpack.c.bf16 %v1423, %v1423
    %v1426 = vpack.c.bf16 %v1424, %v1424
    %1427 = vrot.lane.b32.xlu0 %v978, 40
    %v1428 = vpop.permute.xlu0 %1427
    %v1430 = vsel %vm174, %v1425, 0
    %v1433 = vsel %vm247, %v1428, 0
    %1435 = vmatpush.bf16.msra.mxu0 0
    %1436 = vmatpush.bf16.msra.mxu0 0
    %1437 = vmatpush.bf16.msra.mxu0 0
    %1438 = vmatpush.bf16.msra.mxu0 0
    %1439 = vmatpush.bf16.msra.mxu0 0
    %1440 = vmatpush.bf16.msra.mxu0 0
    %1441 = vmatpush.bf16.msra.mxu0 0
    %1442 = vmatpush.bf16.msra.mxu0 %v1433
    %1443 = vmatmul.bf16.gmra.mxu0 %v1430
    %v1444 = vpop.f32.mrf.mxu0
    %v1445 = vadd.f32 0.0, %v1444
    %v1446 = vpop.f32.mrf.mxu0
    %1447 = vdwg.mxu0
    %1448 = vrot.lane.b32.xlu0 %v1002, 40
    %v1449 = vpop.permute.xlu0 %1448
    %v1451 = vsel %vm174, %v1426, 0
    %v1454 = vsel %vm247, %v1449, 0
    %1456 = vmatpush.bf16.msra.mxu0 0
    %1457 = vmatpush.bf16.msra.mxu0 0
    %1458 = vmatpush.bf16.msra.mxu0 0
    %1459 = vmatpush.bf16.msra.mxu0 0
    %1460 = vmatpush.bf16.msra.mxu0 0
    %1461 = vmatpush.bf16.msra.mxu0 0
    %1462 = vmatpush.bf16.msra.mxu0 0
    %1463 = vmatpush.bf16.msra.mxu0 %v1454
    %1464 = vmatmul.bf16.gmra.mxu0 %v1451
    %v1465 = vpop.f32.mrf.mxu0
    %v1466 = vadd.f32 0.0, %v1465
    %v1467 = vpop.f32.mrf.mxu0
    %1468 = vdwg.mxu0
    %v1469 = vpack.c.bf16 %v1466, %v1445
    %v1471 = vsel %vm174, %v1469, 0
    %v1474 = vsel %vm247, %v922, 0
    %1476 = vmatpush.bf16.msra.mxu0 0
    %1477 = vmatpush.bf16.msra.mxu0 0
    %1478 = vmatpush.bf16.msra.mxu0 0
    %1479 = vmatpush.bf16.msra.mxu0 0
    %1480 = vmatpush.bf16.msra.mxu0 0
    %1481 = vmatpush.bf16.msra.mxu0 0
    %1482 = vmatpush.bf16.msra.mxu0 0
    %1483 = vmatpush.bf16.msra.mxu0 %v1474
    %1484 = vmatmul.bf16.gmra.mxu0 %v1471
    %v1485 = vpop.f32.mrf.mxu0
    %v1486 = vadd.f32 0.0, %v1485
    %v1487 = vpop.f32.mrf.mxu0
    %v1488 = vadd.f32 0.0, %v1487
    %1489 = vdwg.mxu0
    %v1491 = vsel %vm174, %v1090, 0
    %v1494 = vsel %vm247, %v919, 0
    %1496 = vmatpush.bf16.msra.mxu0 0
    %1497 = vmatpush.bf16.msra.mxu0 0
    %1498 = vmatpush.bf16.msra.mxu0 0
    %1499 = vmatpush.bf16.msra.mxu0 0
    %1500 = vmatpush.bf16.msra.mxu0 0
    %1501 = vmatpush.bf16.msra.mxu0 0
    %1502 = vmatpush.bf16.msra.mxu0 0
    %1503 = vmatpush.bf16.msra.mxu0 %v1494
    %1504 = vmatmul.bf16.gmra.mxu0 %v1491
    %v1505 = vpop.f32.mrf.mxu0
    %v1506 = vadd.f32 %v1220, %v1505
    %v1507 = vpop.f32.mrf.mxu0
    %v1508 = vadd.f32 %v1222, %v1507
    %1509 = vdwg.mxu0
    %v1510 = vadd.f32 %v1506, %v1353
    %v1511 = vadd.f32 %v1508, %v1355
    %v1512 = vadd.f32 %v1510, %v1486
    %v1513 = vadd.f32 %v1511, %v1488
    %v1514 = vperm.slane %v924, 0
    %v1515 = vadd.f32 %v1512, %v1514
    %v1516 = vadd.f32 %v1513, %v1514
    %v1517 = vadd.f32 %v909, %v1515
    %v1518 = vadd.f32 %v910, %v1516
    %v1519 = vsel %vm44, %v1517, 0.0
    %1520 = vadd.xlane.f32.xlu0 %v1519
    %v1521 = vpop.xlane.xlu0 %1520
    %v1522 = vsel %vm44, %v1518, 0.0
    %1523 = vadd.xlane.f32.xlu0 %v1522
    %v1524 = vpop.xlane.xlu0 %1523
    %v1525 = vmul.f32 %v1521, %v57
    %v1526 = vmul.f32 %v1524, %v57
    %v1527 = vsub.f32 %v1517, %v1525
    %v1528 = vsub.f32 %v1518, %v1526
    %v1529 = vmul.f32 %v1527, %v1527
    %v1530 = vmul.f32 %v1528, %v1528
    %v1531 = vsel %vm44, %v1529, 0.0
    %1532 = vadd.xlane.f32.xlu0 %v1531
    %v1533 = vpop.xlane.xlu0 %1532
    %v1534 = vsel %vm44, %v1530, 0.0
    %1535 = vadd.xlane.f32.xlu0 %v1534
    %v1536 = vpop.xlane.xlu0 %1535
    %v1537 = vmul.f32 %v1533, %v57
    %v1538 = vmul.f32 %v1536, %v57
    %v1539 = vadd.f32 %v1537, 1e-12
    %v1540 = vadd.f32 %v1538, 1e-12
    %v1541 = vrsqrt.pop %v1539
    %v1542 = vmul.f32 %v1541, %v1539
    %v1543 = vmul.f32 %v1542, %v1541
    %v1544 = vmul.f32 0.5, %v1543
    %v1545 = vsub.f32 1.5, %v1544
    %v1546 = vmul.f32 %v1541, %v1545
    %vm1547 = vweird.f32 %v1539
    %vm1548 = vweird.f32 %v1541
    %vm1549 = vmor %vm1547, %vm1548
    %v1550 = vsel %vm1549, %v1541, %v1546
    %v1551 = vrsqrt.pop %v1540
    %v1552 = vmul.f32 %v1551, %v1540
    %v1553 = vmul.f32 %v1552, %v1551
    %v1554 = vmul.f32 0.5, %v1553
    %v1555 = vsub.f32 1.5, %v1554
    %v1556 = vmul.f32 %v1551, %v1555
    %vm1557 = vweird.f32 %v1540
    %vm1558 = vweird.f32 %v1551
    %vm1559 = vmor %vm1557, %vm1558
    %v1560 = vsel %vm1559, %v1551, %v1556
    %v1561 = vmul.f32 %v1527, %v1550
    %v1562 = vmul.f32 %v1528, %v1560
    %v1563 = vperm.slane %v924, 1
    %v1564 = vmul.f32 %v1561, %v1563
    %v1565 = vmul.f32 %v1562, %v1563
    %v1566 = vperm.slane %v924, 2
    %v1567 = vadd.f32 %v1564, %v1566
    %v1568 = vadd.f32 %v1565, %v1566
    %v1569 = vpack.c.bf16 %v1568, %v1567
    %v1571 = vperm.slane %v931, 0
    %v1577 = vunpack.c.l.b16 %v926
    %v1578 = vunpack.c.l.b16 %v927
    %v1579 = vunpack.c.l.b16 %v928
    %v1580 = vunpack.c.l.b16 %v929
    %v1581 = vpack.c.b16 %v1578, %v1577
    %v1582 = vpack.c.b16 %v1580, %v1579
    %v1586 = vsel %vm44, %v1569, 0
    %1588 = vmatpush.bf16.msra.mxu0 0
    %1589 = vmatpush.bf16.msra.mxu0 0
    %1590 = vmatpush.bf16.msra.mxu0 0
    %1591 = vmatpush.bf16.msra.mxu0 0
    %1592 = vmatpush.bf16.msra.mxu0 0
    %1593 = vmatpush.bf16.msra.mxu0 0
    %1594 = vmatpush.bf16.msra.mxu0 %v1582
    %1595 = vmatpush.bf16.msra.mxu0 %v1581
    %1596 = vmatmul.bf16.gmra.mxu0 %v1586
    %v1597 = vpop.f32.mrf.mxu0
    %v1598 = vadd.f32 %v1571, %v1597
    %v1599 = vpop.f32.mrf.mxu0
    %v1600 = vadd.f32 %v1571, %v1599
    %1601 = vdwg.mxu0
    %v1602 = vmul.f32 %v1598, %v1598
    %v1603 = vmul.f32 %v1600, %v1600
    %v1604 = vmul.f32 %v1598, %v1602
    %v1605 = vmul.f32 %v1600, %v1603
    %v1606 = vmul.f32 %v1604, 0.044715
    %v1607 = vmul.f32 %v1605, 0.044715
    %v1608 = vadd.f32 %v1598, %v1606
    %v1609 = vadd.f32 %v1600, %v1607
    %v1610 = vmul.f32 %v1608, 0.7978846
    %v1611 = vmul.f32 %v1609, 0.7978846
    %v1612 = vtanh.pop %v1610
    %v1613 = vtanh.pop %v1611
    %v1614 = vadd.f32 %v1612, 1.0
    %v1615 = vadd.f32 %v1613, 1.0
    %v1616 = vmul.f32 %v1614, 0.5
    %v1617 = vmul.f32 %v1615, 0.5
    %v1618 = vmul.f32 %v1598, %v1616
    %v1619 = vmul.f32 %v1600, %v1617
    %v1620 = vpack.c.bf16 %v1619, %v1618
    %v1621 = vperm.slane %v924, 5
    %v1630 = vunpack.c.l.b16 %v933
    %v1631 = vunpack.c.l.b16 %v934
    %v1632 = vunpack.c.l.b16 %v935
    %v1633 = vunpack.c.l.b16 %v936
    %v1634 = vunpack.c.l.b16 %v937
    %v1635 = vunpack.c.l.b16 %v938
    %v1636 = vunpack.c.l.b16 %v939
    %v1637 = vunpack.c.l.b16 %v940
    %v1638 = vpack.c.b16 %v1631, %v1630
    %v1639 = vpack.c.b16 %v1633, %v1632
    %v1640 = vpack.c.b16 %v1635, %v1634
    %v1641 = vpack.c.b16 %v1637, %v1636
    %v1647 = vsel %vm841, %v1620, 0
    %1649 = vmatpush.bf16.msra.mxu0 0
    %1650 = vmatpush.bf16.msra.mxu0 0
    %1651 = vmatpush.bf16.msra.mxu0 0
    %1652 = vmatpush.bf16.msra.mxu0 0
    %1653 = vmatpush.bf16.msra.mxu0 %v1641
    %1654 = vmatpush.bf16.msra.mxu0 %v1640
    %1655 = vmatpush.bf16.msra.mxu0 %v1639
    %1656 = vmatpush.bf16.msra.mxu0 %v1638
    %1657 = vmatmul.bf16.gmra.mxu0 %v1647
    %v1658 = vpop.f32.mrf.mxu0
    %v1659 = vadd.f32 %v1621, %v1658
    %v1660 = vpop.f32.mrf.mxu0
    %v1661 = vadd.f32 %v1621, %v1660
    %1662 = vdwg.mxu0
    %v1663 = vadd.f32 %v1567, %v1659
    %v1664 = vadd.f32 %v1568, %v1661
    %v1665 = vsel %vm44, %v1663, 0.0
    %1666 = vadd.xlane.f32.xlu0 %v1665
    %v1667 = vpop.xlane.xlu0 %1666
    %v1668 = vsel %vm44, %v1664, 0.0
    %1669 = vadd.xlane.f32.xlu0 %v1668
    %v1670 = vpop.xlane.xlu0 %1669
    %v1671 = vmul.f32 %v1667, %v57
    %v1672 = vmul.f32 %v1670, %v57
    %v1673 = vsub.f32 %v1663, %v1671
    %v1674 = vsub.f32 %v1664, %v1672
    %v1675 = vmul.f32 %v1673, %v1673
    %v1676 = vmul.f32 %v1674, %v1674
    %v1677 = vsel %vm44, %v1675, 0.0
    %1678 = vadd.xlane.f32.xlu0 %v1677
    %v1679 = vpop.xlane.xlu0 %1678
    %v1680 = vsel %vm44, %v1676, 0.0
    %1681 = vadd.xlane.f32.xlu0 %v1680
    %v1682 = vpop.xlane.xlu0 %1681
    %v1683 = vmul.f32 %v1679, %v57
    %v1684 = vmul.f32 %v1682, %v57
    %v1685 = vadd.f32 %v1683, 1e-12
    %v1686 = vadd.f32 %v1684, 1e-12
    %v1687 = vrsqrt.pop %v1685
    %v1688 = vmul.f32 %v1687, %v1685
    %v1689 = vmul.f32 %v1688, %v1687
    %v1690 = vmul.f32 0.5, %v1689
    %v1691 = vsub.f32 1.5, %v1690
    %v1692 = vmul.f32 %v1687, %v1691
    %vm1693 = vweird.f32 %v1685
    %vm1694 = vweird.f32 %v1687
    %vm1695 = vmor %vm1693, %vm1694
    %v1696 = vsel %vm1695, %v1687, %v1692
    %v1697 = vrsqrt.pop %v1686
    %v1698 = vmul.f32 %v1697, %v1686
    %v1699 = vmul.f32 %v1698, %v1697
    %v1700 = vmul.f32 0.5, %v1699
    %v1701 = vsub.f32 1.5, %v1700
    %v1702 = vmul.f32 %v1697, %v1701
    %vm1703 = vweird.f32 %v1686
    %vm1704 = vweird.f32 %v1697
    %vm1705 = vmor %vm1703, %vm1704
    %v1706 = vsel %vm1705, %v1697, %v1702
    %v1707 = vmul.f32 %v1673, %v1696
    %v1708 = vmul.f32 %v1674, %v1706
    %v1709 = vperm.slane %v924, 3
    %v1710 = vmul.f32 %v1707, %v1709
    %v1711 = vmul.f32 %v1708, %v1709
    %v1712 = vperm.slane %v924, 4
    %v1713 = vadd.f32 %v1710, %v1712
    %v1714 = vadd.f32 %v1711, %v1712
    %v1715 = vld [vmem:[%s2] sm:$0x3]
    %v1717 = vrot.slane %v1715, 1
    %v1720 = vadd.f32 %v1713, %v1715
    %v1721 = vadd.f32 %v1714, %v1717
    %v1724 = vrot.slane %v1721, 7
    %vm1725 = vcmask 1041409
    %v1726 = vsel %vm1725, %v1724, %v1720
    %vm1728 = vcmask 254976
    %1729 = vst.msk [vmem:[#allocation2] sm:$0x3] %vm1728, %v1726
    // Predicated region
    $region46: #{base_bert_forward.1} parent=1 // pred_check
      _
    $region47: #{base_bert_forward.1} parent=1 // pred_check_branch
      %1731 = sbr.rel (0) target = $region49
    $region48: #{base_bert_forward.1} parent=1 // pred_region
      %1733 = vsyncadd [#allocation3], 0
      %s1735 = sshll.u32 [#allocation2], 4
      %s1736 = int_to_ptr.vmem [resolvable:$true] %s1735
      %s1737 = sshll.u32 %s11, 4
      %s1738 = int_to_ptr.hbm [resolvable:$true] %s1737
      %1740 = dma.vmem_to_hbm [thread:$0]  %s1736, 32, %s1738, [#allocation3]
    $region49: #{base_bert_forward.1} parent=1 // pred_fallthru
      _
    // Predicated region
    $region50: #{base_bert_forward.1} parent=1 // pred_check
      _
    $region51: #{base_bert_forward.1} parent=1 // pred_check_branch
      %1742 = sbr.rel (0) target = $region53
    $region52: #{base_bert_forward.1} parent=1 // pred_region
      %1744 = dma.done [#allocation3], 32
    $region53: #{base_bert_forward.1} parent=1 // pred_fallthru
      _
    %1745 = vsyncpa [#allocation3], 1

</llo_original>
